<compile_context>
chip_gen: v7x
topology: tpu7x:2x2x1
jax: 0.10.0
libtpu: 0.0.40
codegen_flags: <defaults>
</compile_context>

<pallas_src>
import jax
import jax.numpy as jnp
from jax.experimental import pallas as pl
from jax.experimental.pallas import tpu as pltpu


def _deinterleave_kernel(x_ref, o_ref):
    # x_ref: (tb, H*W*C)   o_ref: (tb*C, H*W)
    tb, hwc = x_ref.shape
    tbc, hw = o_ref.shape
    c = hwc // hw
    x = x_ref[...].reshape(tb, hw, c)                 # split the packed lane axis
    o_ref[...] = jnp.swapaxes(x, 1, 2).reshape(tbc, hw)  # single XLU minor-dim swap


def _ceil_to(x, m):
    return -(-x // m) * m


def _padded_block_bytes(tb, hw, c, itemsize):
    """Actual (vreg-padded) VMEM footprint of one input block + one output block."""
    hwc = hw * c
    in_bytes = _ceil_to(tb, 8) * _ceil_to(hwc, 128) * itemsize
    out_bytes = _ceil_to(tb * c, 8) * _ceil_to(hw, 128) * itemsize
    return in_bytes + out_bytes


def _pick_batch_tile(n, hw, c, itemsize, *, double_buffered_budget_bytes):
    """Largest divisor of n whose double-buffered (in+out) PADDED footprint fits
    the budget.  Only force >=2 grid steps when the total transfer is large
    enough that a 2-TensorCore split (v7x) beats the extra per-step overhead."""
    divisors = [d for d in range(1, n + 1) if n % d == 0]
    fitting = [
        d for d in divisors
        if 2 * _padded_block_bytes(d, hw, c, itemsize) <= double_buffered_budget_bytes
    ]
    if not fitting:
        # Even a single batch element overflows the budget; fall back to tb=1
        # and let the compiler cope (not hit for realistic feature-map sizes).
        return 1
    tb = max(fitting)
    total_bytes = 2 * n * hw * c * itemsize  # HBM read + write
    if total_bytes >= 8 * 1024 * 1024 and n // tb < 2:
        smaller = [d for d in fitting if n // d >= 2]
        if smaller:
            tb = max(smaller)
    return tb


def cnn_to_lstm_pallas(x, *, vmem_budget_bytes=16 * 1024 * 1024):
    """NHWC (N,H,W,C) -> (N, C, H*W), matching permute(0,3,1,2)+view."""
    n, h, w, c = x.shape
    hw = h * w
    hwc = hw * c
    itemsize = jnp.dtype(x.dtype).itemsize

    tb = _pick_batch_tile(
        n, hw, c, itemsize, double_buffered_budget_bytes=vmem_budget_bytes
    )

    # Free metadata reshape on contiguous NHWC: lane dim becomes H*W*C (packed).
    x_flat = x.reshape(n, hwc)

    # TODO(synk): if H*W is not a multiple of 128 (e.g. 7x7 feature maps) the
    # output vst is lane-masked; padding HW up to 128 in the wrapper would keep
    # stores unmasked at the cost of a trailing slice.
    out_flat = pl.pallas_call(
        _deinterleave_kernel,
        out_shape=jax.ShapeDtypeStruct((n * c, hw), x.dtype),
        grid=(n // tb,),
        in_specs=[pl.BlockSpec((tb, hwc), lambda i: (i, 0))],
        out_specs=pl.BlockSpec((tb * c, hw), lambda i: (i, 0)),
        compiler_params=pltpu.CompilerParams(
            dimension_semantics=("parallel",),
            vmem_limit_bytes=48 * 1024 * 1024,
        ),
    )(x_flat)

    # Free metadata reshape back to the module's (N, C, H*W) output shape.
    return out_flat.reshape(n, c, hw)


if __name__ == "__main__":
    key = jax.random.PRNGKey(0)
    # Small NHWC input implied by the module: batch=2, spatial=16x16, channels=4.
    N, H, W, C = 2, 16, 16, 4
    x = jax.random.normal(key, (N, H, W, C), dtype=jnp.float32)

    y = cnn_to_lstm_pallas(x)
    jax.block_until_ready(y)

    # Reference: permute(0,3,1,2) + view(N, C, -1)
    y_ref = jnp.transpose(x, (0, 3, 1, 2)).reshape(N, C, H * W)
    assert y.shape == (N, C, H * W), y.shape
    assert y.dtype == x.dtype
    assert jnp.array_equal(y, y_ref)

    print("KERNEL_OK")
</pallas_src>

<mosaic_0001>
module attributes {stable_mosaic.version = 11 : i64} {
  func.func @_deinterleave_kernel(%arg0: i32, %arg1: memref<2x1024xf32, #tpu.memory_space<vmem>>, %arg2: memref<8x256xf32, #tpu.memory_space<vmem>>) attributes {dimension_semantics = [#tpu.dimension_semantics<parallel>], iteration_bounds = array<i64: 1>, scalar_prefetch = 0 : i64, scratch_operands = 0 : i64, tpu.core_type = #tpu.core_type<tc>, window_params = [{transform_indices = @transform_0, window_bounds = array<i64: 2, 1024>}, {transform_indices = @transform_1, window_bounds = array<i64: 8, 256>}]} {
    %c0 = arith.constant 0 : index
    %c0_0 = arith.constant 0 : index
    %0 = vector.load %arg1[%c0, %c0_0] : memref<2x1024xf32, #tpu.memory_space<vmem>>, vector<2x1024xf32>
    %1 = vector.shape_cast %0 : vector<2x1024xf32> to vector<2x256x4xf32>
    %2 = tpu.transpose %1, [0, 2, 1] : vector<2x256x4xf32> -> vector<2x4x256xf32>
    %3 = vector.shape_cast %2 : vector<2x4x256xf32> to vector<8x256xf32>
    %c0_1 = arith.constant 0 : index
    %c0_2 = arith.constant 0 : index
    %4 = vector.load %arg2[%c0_1, %c0_2] : memref<8x256xf32, #tpu.memory_space<vmem>>, vector<8x256xf32>
    tpu.vector_store %arg2[%c0_1, %c0_2], %3 {strides = array<i32>} : memref<8x256xf32, #tpu.memory_space<vmem>>, vector<8x256xf32>,
    return
  }
  func.func @transform_0(%arg0: i32) -> (i32, i32) {
    %c0_i32 = arith.constant 0 : i32
    %c0_i32_0 = arith.constant 0 : i32
    return %arg0, %c0_i32 : i32, i32
  }
  func.func @transform_1(%arg0: i32) -> (i32, i32) {
    %c0_i32 = arith.constant 0 : i32
    %c0_i32_0 = arith.constant 0 : i32
    return %arg0, %c0_i32 : i32, i32
  }
}

</mosaic_0001>

<llo_original>
// kernel: tpu_custom_call.1
$region0: #{tpu_custom_call.1}
  #allocation0 [shape = 'u32[]', space=smem, size = 0x4, offset = 0x4, fixed_abs, tag = 'smem constant byte address 0x4 - core index']
  #allocation1 [shape = 'u32[144,128]{1,0:T(1,128)}', space=vmem, size = 0x12000, scoped, tag = 'internal scratch']
  %s0 = inlined_call_operand.hbm [shape: f32[2,1024], index: 0, kind: input, shape index: {}]
  %s1 = inlined_call_operand.hbm [shape: f32[8,256], index: 1, kind: output, shape index: {}]
  %s2 = sld [smem:[#allocation0]]
  $region18: #{tpu_custom_call.1} parent=0
    _
  %s4 = ssub.s32 1, %s2
  %s5 = scalar_select 0, %s4, %s2
  $region1: #{tpu_custom_call.1} parent=0
    #allocation2 [shape = 'u8[8192]{0}', space=vmem, size = 0x2000, scoped, tag = 'input window, operand 0, single buffered']
    #allocation3 [shape = 's32[1]{0}', space=sflag, size = 0x4, scoped, tag = 'scoped memory for tpu_custom_call.1']
    #allocation4 [shape = 's32[1]{0}', space=sflag, size = 0x4, scoped, tag = 'scoped memory for tpu_custom_call.1']
    #allocation5 [shape = 'u8[8192]{0}', space=vmem, size = 0x2000, scoped, tag = 'output window, operand 0, single buffered']
    %6 = vsyncpa [#allocation3], 0
    %7 = vsyncpa [#allocation4], 0
    // Predicated region
    $region2: #{tpu_custom_call.1} parent=1 // pred_check
      _
    $region3: #{tpu_custom_call.1} parent=1 // pred_check_branch
      %9 = sbr.rel (0) target = $region5
    $region4: #{tpu_custom_call.1} parent=1 // pred_region
      %s11 = ssub.s32 256, 256
      %12 = vsyncadd [#allocation3], %s11
      %s14 = sshll.u32 [#allocation2], 4
      %s15 = int_to_ptr.vmem [resolvable:$true] %s14
      %17 = dma.hbm_to_vmem [thread:$0]  %s0, 256, %s15, [#allocation3]
    $region5: #{tpu_custom_call.1} parent=1 // pred_fallthru
      _
    // Predicated region
    $region6: #{tpu_custom_call.1} parent=1 // pred_check
      _
    $region7: #{tpu_custom_call.1} parent=1 // pred_check_branch
      %19 = sbr.rel (0) target = $region9
    $region8: #{tpu_custom_call.1} parent=1 // pred_region
      %20 = dma.done [#allocation3], 256
    $region9: #{tpu_custom_call.1} parent=1 // pred_fallthru
      _
    %v21 = vld [vmem:[#allocation2] sm:$0xff]
    %v22 = vld [vmem:[#allocation2 + $0x8] sm:$0xff]
    %v24 = vrot.slane %v21, 2
    %26 = vrot.lane.b32.xlu0 %v21, 124
    %v27 = vpop.permute.xlu0 %26
    %v28 = vrot.slane %v27, 2
    %30 = vrot.lane.b32.xlu0 %v21, 120
    %v31 = vpop.permute.xlu0 %30
    %v32 = vrot.slane %v31, 2
    %34 = vrot.lane.b32.xlu0 %v21, 116
    %v35 = vpop.permute.xlu0 %34
    %v36 = vrot.slane %v35, 2
    %38 = vrot.lane.b32.xlu0 %v21, 112
    %v39 = vpop.permute.xlu0 %38
    %v40 = vrot.slane %v39, 2
    %42 = vrot.lane.b32.xlu0 %v21, 108
    %v43 = vpop.permute.xlu0 %42
    %v44 = vrot.slane %v43, 2
    %46 = vrot.lane.b32.xlu0 %v21, 104
    %v47 = vpop.permute.xlu0 %46
    %v48 = vrot.slane %v47, 2
    %50 = vrot.lane.b32.xlu0 %v21, 100
    %v51 = vpop.permute.xlu0 %50
    %v52 = vrot.slane %v51, 2
    %54 = vrot.lane.b32.xlu0 %v21, 96
    %v55 = vpop.permute.xlu0 %54
    %v56 = vrot.slane %v55, 2
    %58 = vrot.lane.b32.xlu0 %v21, 92
    %v59 = vpop.permute.xlu0 %58
    %v60 = vrot.slane %v59, 2
    %62 = vrot.lane.b32.xlu0 %v21, 88
    %v63 = vpop.permute.xlu0 %62
    %v64 = vrot.slane %v63, 2
    %66 = vrot.lane.b32.xlu0 %v21, 84
    %v67 = vpop.permute.xlu0 %66
    %v68 = vrot.slane %v67, 2
    %70 = vrot.lane.b32.xlu0 %v21, 80
    %v71 = vpop.permute.xlu0 %70
    %v72 = vrot.slane %v71, 2
    %74 = vrot.lane.b32.xlu0 %v21, 76
    %v75 = vpop.permute.xlu0 %74
    %v76 = vrot.slane %v75, 2
    %78 = vrot.lane.b32.xlu0 %v21, 72
    %v79 = vpop.permute.xlu0 %78
    %v80 = vrot.slane %v79, 2
    %82 = vrot.lane.b32.xlu0 %v21, 68
    %v83 = vpop.permute.xlu0 %82
    %v84 = vrot.slane %v83, 2
    %86 = vrot.lane.b32.xlu0 %v21, 64
    %v87 = vpop.permute.xlu0 %86
    %v88 = vrot.slane %v87, 2
    %90 = vrot.lane.b32.xlu0 %v21, 60
    %v91 = vpop.permute.xlu0 %90
    %v92 = vrot.slane %v91, 2
    %94 = vrot.lane.b32.xlu0 %v21, 56
    %v95 = vpop.permute.xlu0 %94
    %v96 = vrot.slane %v95, 2
    %98 = vrot.lane.b32.xlu0 %v21, 52
    %v99 = vpop.permute.xlu0 %98
    %v100 = vrot.slane %v99, 2
    %102 = vrot.lane.b32.xlu0 %v21, 48
    %v103 = vpop.permute.xlu0 %102
    %v104 = vrot.slane %v103, 2
    %106 = vrot.lane.b32.xlu0 %v21, 44
    %v107 = vpop.permute.xlu0 %106
    %v108 = vrot.slane %v107, 2
    %110 = vrot.lane.b32.xlu0 %v21, 40
    %v111 = vpop.permute.xlu0 %110
    %v112 = vrot.slane %v111, 2
    %114 = vrot.lane.b32.xlu0 %v21, 36
    %v115 = vpop.permute.xlu0 %114
    %v116 = vrot.slane %v115, 2
    %118 = vrot.lane.b32.xlu0 %v21, 32
    %v119 = vpop.permute.xlu0 %118
    %v120 = vrot.slane %v119, 2
    %122 = vrot.lane.b32.xlu0 %v21, 28
    %v123 = vpop.permute.xlu0 %122
    %v124 = vrot.slane %v123, 2
    %126 = vrot.lane.b32.xlu0 %v21, 24
    %v127 = vpop.permute.xlu0 %126
    %v128 = vrot.slane %v127, 2
    %130 = vrot.lane.b32.xlu0 %v21, 20
    %v131 = vpop.permute.xlu0 %130
    %v132 = vrot.slane %v131, 2
    %134 = vrot.lane.b32.xlu0 %v21, 16
    %v135 = vpop.permute.xlu0 %134
    %v136 = vrot.slane %v135, 2
    %138 = vrot.lane.b32.xlu0 %v21, 12
    %v139 = vpop.permute.xlu0 %138
    %v140 = vrot.slane %v139, 2
    %142 = vrot.lane.b32.xlu0 %v21, 8
    %v143 = vpop.permute.xlu0 %142
    %v144 = vrot.slane %v143, 2
    %146 = vrot.lane.b32.xlu0 %v21, 4
    %v147 = vpop.permute.xlu0 %146
    %v148 = vrot.slane %v147, 2
    %v150 = vrot.slane %v21, 4
    %v152 = vrot.slane %v27, 4
    %v154 = vrot.slane %v31, 4
    %v156 = vrot.slane %v35, 4
    %v158 = vrot.slane %v39, 4
    %v160 = vrot.slane %v43, 4
    %v162 = vrot.slane %v47, 4
    %v164 = vrot.slane %v51, 4
    %v166 = vrot.slane %v55, 4
    %v168 = vrot.slane %v59, 4
    %v170 = vrot.slane %v63, 4
    %v172 = vrot.slane %v67, 4
    %v174 = vrot.slane %v71, 4
    %v176 = vrot.slane %v75, 4
    %v178 = vrot.slane %v79, 4
    %v180 = vrot.slane %v83, 4
    %v182 = vrot.slane %v87, 4
    %v184 = vrot.slane %v91, 4
    %v186 = vrot.slane %v95, 4
    %v188 = vrot.slane %v99, 4
    %v190 = vrot.slane %v103, 4
    %v192 = vrot.slane %v107, 4
    %v194 = vrot.slane %v111, 4
    %v196 = vrot.slane %v115, 4
    %v198 = vrot.slane %v119, 4
    %v200 = vrot.slane %v123, 4
    %v202 = vrot.slane %v127, 4
    %v204 = vrot.slane %v131, 4
    %v206 = vrot.slane %v135, 4
    %v208 = vrot.slane %v139, 4
    %v210 = vrot.slane %v143, 4
    %v212 = vrot.slane %v147, 4
    %v214 = vrot.slane %v21, 6
    %v216 = vrot.slane %v27, 6
    %v218 = vrot.slane %v31, 6
    %v220 = vrot.slane %v35, 6
    %v222 = vrot.slane %v39, 6
    %v224 = vrot.slane %v43, 6
    %v226 = vrot.slane %v47, 6
    %v228 = vrot.slane %v51, 6
    %v230 = vrot.slane %v55, 6
    %v232 = vrot.slane %v59, 6
    %v234 = vrot.slane %v63, 6
    %v236 = vrot.slane %v67, 6
    %v238 = vrot.slane %v71, 6
    %v240 = vrot.slane %v75, 6
    %v242 = vrot.slane %v79, 6
    %v244 = vrot.slane %v83, 6
    %v246 = vrot.slane %v87, 6
    %v248 = vrot.slane %v91, 6
    %v250 = vrot.slane %v95, 6
    %v252 = vrot.slane %v99, 6
    %v254 = vrot.slane %v103, 6
    %v256 = vrot.slane %v107, 6
    %v258 = vrot.slane %v111, 6
    %v260 = vrot.slane %v115, 6
    %v262 = vrot.slane %v119, 6
    %v264 = vrot.slane %v123, 6
    %v266 = vrot.slane %v127, 6
    %v268 = vrot.slane %v131, 6
    %v270 = vrot.slane %v135, 6
    %v272 = vrot.slane %v139, 6
    %v274 = vrot.slane %v143, 6
    %v276 = vrot.slane %v147, 6
    %v279 = vrot.slane %v22, 2
    %281 = vrot.lane.b32.xlu0 %v22, 124
    %v282 = vpop.permute.xlu0 %281
    %v283 = vrot.slane %v282, 2
    %285 = vrot.lane.b32.xlu0 %v22, 120
    %v286 = vpop.permute.xlu0 %285
    %v287 = vrot.slane %v286, 2
    %289 = vrot.lane.b32.xlu0 %v22, 116
    %v290 = vpop.permute.xlu0 %289
    %v291 = vrot.slane %v290, 2
    %293 = vrot.lane.b32.xlu0 %v22, 112
    %v294 = vpop.permute.xlu0 %293
    %v295 = vrot.slane %v294, 2
    %297 = vrot.lane.b32.xlu0 %v22, 108
    %v298 = vpop.permute.xlu0 %297
    %v299 = vrot.slane %v298, 2
    %301 = vrot.lane.b32.xlu0 %v22, 104
    %v302 = vpop.permute.xlu0 %301
    %v303 = vrot.slane %v302, 2
    %305 = vrot.lane.b32.xlu0 %v22, 100
    %v306 = vpop.permute.xlu0 %305
    %v307 = vrot.slane %v306, 2
    %309 = vrot.lane.b32.xlu0 %v22, 96
    %v310 = vpop.permute.xlu0 %309
    %v311 = vrot.slane %v310, 2
    %313 = vrot.lane.b32.xlu0 %v22, 92
    %v314 = vpop.permute.xlu0 %313
    %v315 = vrot.slane %v314, 2
    %317 = vrot.lane.b32.xlu0 %v22, 88
    %v318 = vpop.permute.xlu0 %317
    %v319 = vrot.slane %v318, 2
    %321 = vrot.lane.b32.xlu0 %v22, 84
    %v322 = vpop.permute.xlu0 %321
    %v323 = vrot.slane %v322, 2
    %325 = vrot.lane.b32.xlu0 %v22, 80
    %v326 = vpop.permute.xlu0 %325
    %v327 = vrot.slane %v326, 2
    %329 = vrot.lane.b32.xlu0 %v22, 76
    %v330 = vpop.permute.xlu0 %329
    %v331 = vrot.slane %v330, 2
    %333 = vrot.lane.b32.xlu0 %v22, 72
    %v334 = vpop.permute.xlu0 %333
    %v335 = vrot.slane %v334, 2
    %337 = vrot.lane.b32.xlu0 %v22, 68
    %v338 = vpop.permute.xlu0 %337
    %v339 = vrot.slane %v338, 2
    %341 = vrot.lane.b32.xlu0 %v22, 64
    %v342 = vpop.permute.xlu0 %341
    %v343 = vrot.slane %v342, 2
    %345 = vrot.lane.b32.xlu0 %v22, 60
    %v346 = vpop.permute.xlu0 %345
    %v347 = vrot.slane %v346, 2
    %349 = vrot.lane.b32.xlu0 %v22, 56
    %v350 = vpop.permute.xlu0 %349
    %v351 = vrot.slane %v350, 2
    %353 = vrot.lane.b32.xlu0 %v22, 52
    %v354 = vpop.permute.xlu0 %353
    %v355 = vrot.slane %v354, 2
    %357 = vrot.lane.b32.xlu0 %v22, 48
    %v358 = vpop.permute.xlu0 %357
    %v359 = vrot.slane %v358, 2
    %361 = vrot.lane.b32.xlu0 %v22, 44
    %v362 = vpop.permute.xlu0 %361
    %v363 = vrot.slane %v362, 2
    %365 = vrot.lane.b32.xlu0 %v22, 40
    %v366 = vpop.permute.xlu0 %365
    %v367 = vrot.slane %v366, 2
    %369 = vrot.lane.b32.xlu0 %v22, 36
    %v370 = vpop.permute.xlu0 %369
    %v371 = vrot.slane %v370, 2
    %373 = vrot.lane.b32.xlu0 %v22, 32
    %v374 = vpop.permute.xlu0 %373
    %v375 = vrot.slane %v374, 2
    %377 = vrot.lane.b32.xlu0 %v22, 28
    %v378 = vpop.permute.xlu0 %377
    %v379 = vrot.slane %v378, 2
    %381 = vrot.lane.b32.xlu0 %v22, 24
    %v382 = vpop.permute.xlu0 %381
    %v383 = vrot.slane %v382, 2
    %385 = vrot.lane.b32.xlu0 %v22, 20
    %v386 = vpop.permute.xlu0 %385
    %v387 = vrot.slane %v386, 2
    %389 = vrot.lane.b32.xlu0 %v22, 16
    %v390 = vpop.permute.xlu0 %389
    %v391 = vrot.slane %v390, 2
    %393 = vrot.lane.b32.xlu0 %v22, 12
    %v394 = vpop.permute.xlu0 %393
    %v395 = vrot.slane %v394, 2
    %397 = vrot.lane.b32.xlu0 %v22, 8
    %v398 = vpop.permute.xlu0 %397
    %v399 = vrot.slane %v398, 2
    %401 = vrot.lane.b32.xlu0 %v22, 4
    %v402 = vpop.permute.xlu0 %401
    %v403 = vrot.slane %v402, 2
    %v405 = vrot.slane %v22, 4
    %v407 = vrot.slane %v282, 4
    %v409 = vrot.slane %v286, 4
    %v411 = vrot.slane %v290, 4
    %v413 = vrot.slane %v294, 4
    %v415 = vrot.slane %v298, 4
    %v417 = vrot.slane %v302, 4
    %v419 = vrot.slane %v306, 4
    %v421 = vrot.slane %v310, 4
    %v423 = vrot.slane %v314, 4
    %v425 = vrot.slane %v318, 4
    %v427 = vrot.slane %v322, 4
    %v429 = vrot.slane %v326, 4
    %v431 = vrot.slane %v330, 4
    %v433 = vrot.slane %v334, 4
    %v435 = vrot.slane %v338, 4
    %v437 = vrot.slane %v342, 4
    %v439 = vrot.slane %v346, 4
    %v441 = vrot.slane %v350, 4
    %v443 = vrot.slane %v354, 4
    %v445 = vrot.slane %v358, 4
    %v447 = vrot.slane %v362, 4
    %v449 = vrot.slane %v366, 4
    %v451 = vrot.slane %v370, 4
    %v453 = vrot.slane %v374, 4
    %v455 = vrot.slane %v378, 4
    %v457 = vrot.slane %v382, 4
    %v459 = vrot.slane %v386, 4
    %v461 = vrot.slane %v390, 4
    %v463 = vrot.slane %v394, 4
    %v465 = vrot.slane %v398, 4
    %v467 = vrot.slane %v402, 4
    %v469 = vrot.slane %v22, 6
    %v471 = vrot.slane %v282, 6
    %v473 = vrot.slane %v286, 6
    %v475 = vrot.slane %v290, 6
    %v477 = vrot.slane %v294, 6
    %v479 = vrot.slane %v298, 6
    %v481 = vrot.slane %v302, 6
    %v483 = vrot.slane %v306, 6
    %v485 = vrot.slane %v310, 6
    %v487 = vrot.slane %v314, 6
    %v489 = vrot.slane %v318, 6
    %v491 = vrot.slane %v322, 6
    %v493 = vrot.slane %v326, 6
    %v495 = vrot.slane %v330, 6
    %v497 = vrot.slane %v334, 6
    %v499 = vrot.slane %v338, 6
    %v501 = vrot.slane %v342, 6
    %v503 = vrot.slane %v346, 6
    %v505 = vrot.slane %v350, 6
    %v507 = vrot.slane %v354, 6
    %v509 = vrot.slane %v358, 6
    %v511 = vrot.slane %v362, 6
    %v513 = vrot.slane %v366, 6
    %v515 = vrot.slane %v370, 6
    %v517 = vrot.slane %v374, 6
    %v519 = vrot.slane %v378, 6
    %v521 = vrot.slane %v382, 6
    %v523 = vrot.slane %v386, 6
    %v525 = vrot.slane %v390, 6
    %v527 = vrot.slane %v394, 6
    %v529 = vrot.slane %v398, 6
    %v531 = vrot.slane %v402, 6
    %v595 = vcombine.low %v21, %v27
    %v597 = vunpack.c.l.s4 1934713408
    %v598 = vunpack.c.0.s8 %v597
    %v599 = vlaneseq
    %v600 = vshrl.u32 %v599, 7
    %v601 = vsub.s32 %v598, %v600
    %v602 = vrot.slane %v595, %v601
    %v603 = vcombine.high %v602, 0.0
    %v604 = vcombine.low %v31, %v35
    %v606 = vunpack.c.l.s4 1934713408
    %v607 = vunpack.c.0.s8 %v606
    %v608 = vlaneseq
    %v609 = vshrl.u32 %v608, 7
    %v610 = vsub.s32 %v607, %v609
    %v611 = vrot.slane %v604, %v610
    %v612 = vcombine.high %v611, 0.0
    %v613 = vcombine.low %v39, %v43
    %v615 = vunpack.c.l.s4 1934713408
    %v616 = vunpack.c.0.s8 %v615
    %v617 = vlaneseq
    %v618 = vshrl.u32 %v617, 7
    %v619 = vsub.s32 %v616, %v618
    %v620 = vrot.slane %v613, %v619
    %v621 = vcombine.high %v620, 0.0
    %v622 = vcombine.low %v47, %v51
    %v624 = vunpack.c.l.s4 1934713408
    %v625 = vunpack.c.0.s8 %v624
    %v626 = vlaneseq
    %v627 = vshrl.u32 %v626, 7
    %v628 = vsub.s32 %v625, %v627
    %v629 = vrot.slane %v622, %v628
    %v630 = vcombine.high %v629, 0.0
    %v631 = vcombine.low %v55, %v59
    %v633 = vunpack.c.l.s4 1934713408
    %v634 = vunpack.c.0.s8 %v633
    %v635 = vlaneseq
    %v636 = vshrl.u32 %v635, 7
    %v637 = vsub.s32 %v634, %v636
    %v638 = vrot.slane %v631, %v637
    %v639 = vcombine.high %v638, 0.0
    %v640 = vcombine.low %v63, %v67
    %v642 = vunpack.c.l.s4 1934713408
    %v643 = vunpack.c.0.s8 %v642
    %v644 = vlaneseq
    %v645 = vshrl.u32 %v644, 7
    %v646 = vsub.s32 %v643, %v645
    %v647 = vrot.slane %v640, %v646
    %v648 = vcombine.high %v647, 0.0
    %v649 = vcombine.low %v71, %v75
    %v651 = vunpack.c.l.s4 1934713408
    %v652 = vunpack.c.0.s8 %v651
    %v653 = vlaneseq
    %v654 = vshrl.u32 %v653, 7
    %v655 = vsub.s32 %v652, %v654
    %v656 = vrot.slane %v649, %v655
    %v657 = vcombine.high %v656, 0.0
    %v658 = vcombine.low %v79, %v83
    %v660 = vunpack.c.l.s4 1934713408
    %v661 = vunpack.c.0.s8 %v660
    %v662 = vlaneseq
    %v663 = vshrl.u32 %v662, 7
    %v664 = vsub.s32 %v661, %v663
    %v665 = vrot.slane %v658, %v664
    %v666 = vcombine.high %v665, 0.0
    %v667 = vcombine.low %v87, %v91
    %v669 = vunpack.c.l.s4 1934713408
    %v670 = vunpack.c.0.s8 %v669
    %v671 = vlaneseq
    %v672 = vshrl.u32 %v671, 7
    %v673 = vsub.s32 %v670, %v672
    %v674 = vrot.slane %v667, %v673
    %v675 = vcombine.high %v674, 0.0
    %v676 = vcombine.low %v95, %v99
    %v678 = vunpack.c.l.s4 1934713408
    %v679 = vunpack.c.0.s8 %v678
    %v680 = vlaneseq
    %v681 = vshrl.u32 %v680, 7
    %v682 = vsub.s32 %v679, %v681
    %v683 = vrot.slane %v676, %v682
    %v684 = vcombine.high %v683, 0.0
    %v685 = vcombine.low %v103, %v107
    %v687 = vunpack.c.l.s4 1934713408
    %v688 = vunpack.c.0.s8 %v687
    %v689 = vlaneseq
    %v690 = vshrl.u32 %v689, 7
    %v691 = vsub.s32 %v688, %v690
    %v692 = vrot.slane %v685, %v691
    %v693 = vcombine.high %v692, 0.0
    %v694 = vcombine.low %v111, %v115
    %v696 = vunpack.c.l.s4 1934713408
    %v697 = vunpack.c.0.s8 %v696
    %v698 = vlaneseq
    %v699 = vshrl.u32 %v698, 7
    %v700 = vsub.s32 %v697, %v699
    %v701 = vrot.slane %v694, %v700
    %v702 = vcombine.high %v701, 0.0
    %v703 = vcombine.low %v119, %v123
    %v705 = vunpack.c.l.s4 1934713408
    %v706 = vunpack.c.0.s8 %v705
    %v707 = vlaneseq
    %v708 = vshrl.u32 %v707, 7
    %v709 = vsub.s32 %v706, %v708
    %v710 = vrot.slane %v703, %v709
    %v711 = vcombine.high %v710, 0.0
    %v712 = vcombine.low %v127, %v131
    %v714 = vunpack.c.l.s4 1934713408
    %v715 = vunpack.c.0.s8 %v714
    %v716 = vlaneseq
    %v717 = vshrl.u32 %v716, 7
    %v718 = vsub.s32 %v715, %v717
    %v719 = vrot.slane %v712, %v718
    %v720 = vcombine.high %v719, 0.0
    %v721 = vcombine.low %v135, %v139
    %v723 = vunpack.c.l.s4 1934713408
    %v724 = vunpack.c.0.s8 %v723
    %v725 = vlaneseq
    %v726 = vshrl.u32 %v725, 7
    %v727 = vsub.s32 %v724, %v726
    %v728 = vrot.slane %v721, %v727
    %v729 = vcombine.high %v728, 0.0
    %v730 = vcombine.low %v143, %v147
    %v732 = vunpack.c.l.s4 1934713408
    %v733 = vunpack.c.0.s8 %v732
    %v734 = vlaneseq
    %v735 = vshrl.u32 %v734, 7
    %v736 = vsub.s32 %v733, %v735
    %v737 = vrot.slane %v730, %v736
    %v738 = vcombine.high %v737, 0.0
    %v739 = vcombine.low %v24, %v28
    %v741 = vunpack.c.l.s4 1934713408
    %v742 = vunpack.c.0.s8 %v741
    %v743 = vlaneseq
    %v744 = vshrl.u32 %v743, 7
    %v745 = vsub.s32 %v742, %v744
    %v746 = vrot.slane %v739, %v745
    %v747 = vcombine.high %v746, 0.0
    %v748 = vcombine.low %v32, %v36
    %v750 = vunpack.c.l.s4 1934713408
    %v751 = vunpack.c.0.s8 %v750
    %v752 = vlaneseq
    %v753 = vshrl.u32 %v752, 7
    %v754 = vsub.s32 %v751, %v753
    %v755 = vrot.slane %v748, %v754
    %v756 = vcombine.high %v755, 0.0
    %v757 = vcombine.low %v40, %v44
    %v759 = vunpack.c.l.s4 1934713408
    %v760 = vunpack.c.0.s8 %v759
    %v761 = vlaneseq
    %v762 = vshrl.u32 %v761, 7
    %v763 = vsub.s32 %v760, %v762
    %v764 = vrot.slane %v757, %v763
    %v765 = vcombine.high %v764, 0.0
    %v766 = vcombine.low %v48, %v52
    %v768 = vunpack.c.l.s4 1934713408
    %v769 = vunpack.c.0.s8 %v768
    %v770 = vlaneseq
    %v771 = vshrl.u32 %v770, 7
    %v772 = vsub.s32 %v769, %v771
    %v773 = vrot.slane %v766, %v772
    %v774 = vcombine.high %v773, 0.0
    %v775 = vcombine.low %v56, %v60
    %v777 = vunpack.c.l.s4 1934713408
    %v778 = vunpack.c.0.s8 %v777
    %v779 = vlaneseq
    %v780 = vshrl.u32 %v779, 7
    %v781 = vsub.s32 %v778, %v780
    %v782 = vrot.slane %v775, %v781
    %v783 = vcombine.high %v782, 0.0
    %v784 = vcombine.low %v64, %v68
    %v786 = vunpack.c.l.s4 1934713408
    %v787 = vunpack.c.0.s8 %v786
    %v788 = vlaneseq
    %v789 = vshrl.u32 %v788, 7
    %v790 = vsub.s32 %v787, %v789
    %v791 = vrot.slane %v784, %v790
    %v792 = vcombine.high %v791, 0.0
    %v793 = vcombine.low %v72, %v76
    %v795 = vunpack.c.l.s4 1934713408
    %v796 = vunpack.c.0.s8 %v795
    %v797 = vlaneseq
    %v798 = vshrl.u32 %v797, 7
    %v799 = vsub.s32 %v796, %v798
    %v800 = vrot.slane %v793, %v799
    %v801 = vcombine.high %v800, 0.0
    %v802 = vcombine.low %v80, %v84
    %v804 = vunpack.c.l.s4 1934713408
    %v805 = vunpack.c.0.s8 %v804
    %v806 = vlaneseq
    %v807 = vshrl.u32 %v806, 7
    %v808 = vsub.s32 %v805, %v807
    %v809 = vrot.slane %v802, %v808
    %v810 = vcombine.high %v809, 0.0
    %v811 = vcombine.low %v88, %v92
    %v813 = vunpack.c.l.s4 1934713408
    %v814 = vunpack.c.0.s8 %v813
    %v815 = vlaneseq
    %v816 = vshrl.u32 %v815, 7
    %v817 = vsub.s32 %v814, %v816
    %v818 = vrot.slane %v811, %v817
    %v819 = vcombine.high %v818, 0.0
    %v820 = vcombine.low %v96, %v100
    %v822 = vunpack.c.l.s4 1934713408
    %v823 = vunpack.c.0.s8 %v822
    %v824 = vlaneseq
    %v825 = vshrl.u32 %v824, 7
    %v826 = vsub.s32 %v823, %v825
    %v827 = vrot.slane %v820, %v826
    %v828 = vcombine.high %v827, 0.0
    %v829 = vcombine.low %v104, %v108
    %v831 = vunpack.c.l.s4 1934713408
    %v832 = vunpack.c.0.s8 %v831
    %v833 = vlaneseq
    %v834 = vshrl.u32 %v833, 7
    %v835 = vsub.s32 %v832, %v834
    %v836 = vrot.slane %v829, %v835
    %v837 = vcombine.high %v836, 0.0
    %v838 = vcombine.low %v112, %v116
    %v840 = vunpack.c.l.s4 1934713408
    %v841 = vunpack.c.0.s8 %v840
    %v842 = vlaneseq
    %v843 = vshrl.u32 %v842, 7
    %v844 = vsub.s32 %v841, %v843
    %v845 = vrot.slane %v838, %v844
    %v846 = vcombine.high %v845, 0.0
    %v847 = vcombine.low %v120, %v124
    %v849 = vunpack.c.l.s4 1934713408
    %v850 = vunpack.c.0.s8 %v849
    %v851 = vlaneseq
    %v852 = vshrl.u32 %v851, 7
    %v853 = vsub.s32 %v850, %v852
    %v854 = vrot.slane %v847, %v853
    %v855 = vcombine.high %v854, 0.0
    %v856 = vcombine.low %v128, %v132
    %v858 = vunpack.c.l.s4 1934713408
    %v859 = vunpack.c.0.s8 %v858
    %v860 = vlaneseq
    %v861 = vshrl.u32 %v860, 7
    %v862 = vsub.s32 %v859, %v861
    %v863 = vrot.slane %v856, %v862
    %v864 = vcombine.high %v863, 0.0
    %v865 = vcombine.low %v136, %v140
    %v867 = vunpack.c.l.s4 1934713408
    %v868 = vunpack.c.0.s8 %v867
    %v869 = vlaneseq
    %v870 = vshrl.u32 %v869, 7
    %v871 = vsub.s32 %v868, %v870
    %v872 = vrot.slane %v865, %v871
    %v873 = vcombine.high %v872, 0.0
    %v874 = vcombine.low %v144, %v148
    %v876 = vunpack.c.l.s4 1934713408
    %v877 = vunpack.c.0.s8 %v876
    %v878 = vlaneseq
    %v879 = vshrl.u32 %v878, 7
    %v880 = vsub.s32 %v877, %v879
    %v881 = vrot.slane %v874, %v880
    %v882 = vcombine.high %v881, 0.0
    %v883 = vcombine.low %v150, %v152
    %v885 = vunpack.c.l.s4 1934713408
    %v886 = vunpack.c.0.s8 %v885
    %v887 = vlaneseq
    %v888 = vshrl.u32 %v887, 7
    %v889 = vsub.s32 %v886, %v888
    %v890 = vrot.slane %v883, %v889
    %v891 = vcombine.high %v890, 0.0
    %v892 = vcombine.low %v154, %v156
    %v894 = vunpack.c.l.s4 1934713408
    %v895 = vunpack.c.0.s8 %v894
    %v896 = vlaneseq
    %v897 = vshrl.u32 %v896, 7
    %v898 = vsub.s32 %v895, %v897
    %v899 = vrot.slane %v892, %v898
    %v900 = vcombine.high %v899, 0.0
    %v901 = vcombine.low %v158, %v160
    %v903 = vunpack.c.l.s4 1934713408
    %v904 = vunpack.c.0.s8 %v903
    %v905 = vlaneseq
    %v906 = vshrl.u32 %v905, 7
    %v907 = vsub.s32 %v904, %v906
    %v908 = vrot.slane %v901, %v907
    %v909 = vcombine.high %v908, 0.0
    %v910 = vcombine.low %v162, %v164
    %v912 = vunpack.c.l.s4 1934713408
    %v913 = vunpack.c.0.s8 %v912
    %v914 = vlaneseq
    %v915 = vshrl.u32 %v914, 7
    %v916 = vsub.s32 %v913, %v915
    %v917 = vrot.slane %v910, %v916
    %v918 = vcombine.high %v917, 0.0
    %v919 = vcombine.low %v166, %v168
    %v921 = vunpack.c.l.s4 1934713408
    %v922 = vunpack.c.0.s8 %v921
    %v923 = vlaneseq
    %v924 = vshrl.u32 %v923, 7
    %v925 = vsub.s32 %v922, %v924
    %v926 = vrot.slane %v919, %v925
    %v927 = vcombine.high %v926, 0.0
    %v928 = vcombine.low %v170, %v172
    %v930 = vunpack.c.l.s4 1934713408
    %v931 = vunpack.c.0.s8 %v930
    %v932 = vlaneseq
    %v933 = vshrl.u32 %v932, 7
    %v934 = vsub.s32 %v931, %v933
    %v935 = vrot.slane %v928, %v934
    %v936 = vcombine.high %v935, 0.0
    %v937 = vcombine.low %v174, %v176
    %v939 = vunpack.c.l.s4 1934713408
    %v940 = vunpack.c.0.s8 %v939
    %v941 = vlaneseq
    %v942 = vshrl.u32 %v941, 7
    %v943 = vsub.s32 %v940, %v942
    %v944 = vrot.slane %v937, %v943
    %v945 = vcombine.high %v944, 0.0
    %v946 = vcombine.low %v178, %v180
    %v948 = vunpack.c.l.s4 1934713408
    %v949 = vunpack.c.0.s8 %v948
    %v950 = vlaneseq
    %v951 = vshrl.u32 %v950, 7
    %v952 = vsub.s32 %v949, %v951
    %v953 = vrot.slane %v946, %v952
    %v954 = vcombine.high %v953, 0.0
    %v955 = vcombine.low %v182, %v184
    %v957 = vunpack.c.l.s4 1934713408
    %v958 = vunpack.c.0.s8 %v957
    %v959 = vlaneseq
    %v960 = vshrl.u32 %v959, 7
    %v961 = vsub.s32 %v958, %v960
    %v962 = vrot.slane %v955, %v961
    %v963 = vcombine.high %v962, 0.0
    %v964 = vcombine.low %v186, %v188
    %v966 = vunpack.c.l.s4 1934713408
    %v967 = vunpack.c.0.s8 %v966
    %v968 = vlaneseq
    %v969 = vshrl.u32 %v968, 7
    %v970 = vsub.s32 %v967, %v969
    %v971 = vrot.slane %v964, %v970
    %v972 = vcombine.high %v971, 0.0
    %v973 = vcombine.low %v190, %v192
    %v975 = vunpack.c.l.s4 1934713408
    %v976 = vunpack.c.0.s8 %v975
    %v977 = vlaneseq
    %v978 = vshrl.u32 %v977, 7
    %v979 = vsub.s32 %v976, %v978
    %v980 = vrot.slane %v973, %v979
    %v981 = vcombine.high %v980, 0.0
    %v982 = vcombine.low %v194, %v196
    %v984 = vunpack.c.l.s4 1934713408
    %v985 = vunpack.c.0.s8 %v984
    %v986 = vlaneseq
    %v987 = vshrl.u32 %v986, 7
    %v988 = vsub.s32 %v985, %v987
    %v989 = vrot.slane %v982, %v988
    %v990 = vcombine.high %v989, 0.0
    %v991 = vcombine.low %v198, %v200
    %v993 = vunpack.c.l.s4 1934713408
    %v994 = vunpack.c.0.s8 %v993
    %v995 = vlaneseq
    %v996 = vshrl.u32 %v995, 7
    %v997 = vsub.s32 %v994, %v996
    %v998 = vrot.slane %v991, %v997
    %v999 = vcombine.high %v998, 0.0
    %v1000 = vcombine.low %v202, %v204
    %v1002 = vunpack.c.l.s4 1934713408
    %v1003 = vunpack.c.0.s8 %v1002
    %v1004 = vlaneseq
    %v1005 = vshrl.u32 %v1004, 7
    %v1006 = vsub.s32 %v1003, %v1005
    %v1007 = vrot.slane %v1000, %v1006
    %v1008 = vcombine.high %v1007, 0.0
    %v1009 = vcombine.low %v206, %v208
    %v1011 = vunpack.c.l.s4 1934713408
    %v1012 = vunpack.c.0.s8 %v1011
    %v1013 = vlaneseq
    %v1014 = vshrl.u32 %v1013, 7
    %v1015 = vsub.s32 %v1012, %v1014
    %v1016 = vrot.slane %v1009, %v1015
    %v1017 = vcombine.high %v1016, 0.0
    %v1018 = vcombine.low %v210, %v212
    %v1020 = vunpack.c.l.s4 1934713408
    %v1021 = vunpack.c.0.s8 %v1020
    %v1022 = vlaneseq
    %v1023 = vshrl.u32 %v1022, 7
    %v1024 = vsub.s32 %v1021, %v1023
    %v1025 = vrot.slane %v1018, %v1024
    %v1026 = vcombine.high %v1025, 0.0
    %v1027 = vcombine.low %v214, %v216
    %v1029 = vunpack.c.l.s4 1934713408
    %v1030 = vunpack.c.0.s8 %v1029
    %v1031 = vlaneseq
    %v1032 = vshrl.u32 %v1031, 7
    %v1033 = vsub.s32 %v1030, %v1032
    %v1034 = vrot.slane %v1027, %v1033
    %v1035 = vcombine.high %v1034, 0.0
    %v1036 = vcombine.low %v218, %v220
    %v1038 = vunpack.c.l.s4 1934713408
    %v1039 = vunpack.c.0.s8 %v1038
    %v1040 = vlaneseq
    %v1041 = vshrl.u32 %v1040, 7
    %v1042 = vsub.s32 %v1039, %v1041
    %v1043 = vrot.slane %v1036, %v1042
    %v1044 = vcombine.high %v1043, 0.0
    %v1045 = vcombine.low %v222, %v224
    %v1047 = vunpack.c.l.s4 1934713408
    %v1048 = vunpack.c.0.s8 %v1047
    %v1049 = vlaneseq
    %v1050 = vshrl.u32 %v1049, 7
    %v1051 = vsub.s32 %v1048, %v1050
    %v1052 = vrot.slane %v1045, %v1051
    %v1053 = vcombine.high %v1052, 0.0
    %v1054 = vcombine.low %v226, %v228
    %v1056 = vunpack.c.l.s4 1934713408
    %v1057 = vunpack.c.0.s8 %v1056
    %v1058 = vlaneseq
    %v1059 = vshrl.u32 %v1058, 7
    %v1060 = vsub.s32 %v1057, %v1059
    %v1061 = vrot.slane %v1054, %v1060
    %v1062 = vcombine.high %v1061, 0.0
    %v1063 = vcombine.low %v230, %v232
    %v1065 = vunpack.c.l.s4 1934713408
    %v1066 = vunpack.c.0.s8 %v1065
    %v1067 = vlaneseq
    %v1068 = vshrl.u32 %v1067, 7
    %v1069 = vsub.s32 %v1066, %v1068
    %v1070 = vrot.slane %v1063, %v1069
    %v1071 = vcombine.high %v1070, 0.0
    %v1072 = vcombine.low %v234, %v236
    %v1074 = vunpack.c.l.s4 1934713408
    %v1075 = vunpack.c.0.s8 %v1074
    %v1076 = vlaneseq
    %v1077 = vshrl.u32 %v1076, 7
    %v1078 = vsub.s32 %v1075, %v1077
    %v1079 = vrot.slane %v1072, %v1078
    %v1080 = vcombine.high %v1079, 0.0
    %v1081 = vcombine.low %v238, %v240
    %v1083 = vunpack.c.l.s4 1934713408
    %v1084 = vunpack.c.0.s8 %v1083
    %v1085 = vlaneseq
    %v1086 = vshrl.u32 %v1085, 7
    %v1087 = vsub.s32 %v1084, %v1086
    %v1088 = vrot.slane %v1081, %v1087
    %v1089 = vcombine.high %v1088, 0.0
    %v1090 = vcombine.low %v242, %v244
    %v1092 = vunpack.c.l.s4 1934713408
    %v1093 = vunpack.c.0.s8 %v1092
    %v1094 = vlaneseq
    %v1095 = vshrl.u32 %v1094, 7
    %v1096 = vsub.s32 %v1093, %v1095
    %v1097 = vrot.slane %v1090, %v1096
    %v1098 = vcombine.high %v1097, 0.0
    %v1099 = vcombine.low %v246, %v248
    %v1101 = vunpack.c.l.s4 1934713408
    %v1102 = vunpack.c.0.s8 %v1101
    %v1103 = vlaneseq
    %v1104 = vshrl.u32 %v1103, 7
    %v1105 = vsub.s32 %v1102, %v1104
    %v1106 = vrot.slane %v1099, %v1105
    %v1107 = vcombine.high %v1106, 0.0
    %v1108 = vcombine.low %v250, %v252
    %v1110 = vunpack.c.l.s4 1934713408
    %v1111 = vunpack.c.0.s8 %v1110
    %v1112 = vlaneseq
    %v1113 = vshrl.u32 %v1112, 7
    %v1114 = vsub.s32 %v1111, %v1113
    %v1115 = vrot.slane %v1108, %v1114
    %v1116 = vcombine.high %v1115, 0.0
    %v1117 = vcombine.low %v254, %v256
    %v1119 = vunpack.c.l.s4 1934713408
    %v1120 = vunpack.c.0.s8 %v1119
    %v1121 = vlaneseq
    %v1122 = vshrl.u32 %v1121, 7
    %v1123 = vsub.s32 %v1120, %v1122
    %v1124 = vrot.slane %v1117, %v1123
    %v1125 = vcombine.high %v1124, 0.0
    %v1126 = vcombine.low %v258, %v260
    %v1128 = vunpack.c.l.s4 1934713408
    %v1129 = vunpack.c.0.s8 %v1128
    %v1130 = vlaneseq
    %v1131 = vshrl.u32 %v1130, 7
    %v1132 = vsub.s32 %v1129, %v1131
    %v1133 = vrot.slane %v1126, %v1132
    %v1134 = vcombine.high %v1133, 0.0
    %v1135 = vcombine.low %v262, %v264
    %v1137 = vunpack.c.l.s4 1934713408
    %v1138 = vunpack.c.0.s8 %v1137
    %v1139 = vlaneseq
    %v1140 = vshrl.u32 %v1139, 7
    %v1141 = vsub.s32 %v1138, %v1140
    %v1142 = vrot.slane %v1135, %v1141
    %v1143 = vcombine.high %v1142, 0.0
    %v1144 = vcombine.low %v266, %v268
    %v1146 = vunpack.c.l.s4 1934713408
    %v1147 = vunpack.c.0.s8 %v1146
    %v1148 = vlaneseq
    %v1149 = vshrl.u32 %v1148, 7
    %v1150 = vsub.s32 %v1147, %v1149
    %v1151 = vrot.slane %v1144, %v1150
    %v1152 = vcombine.high %v1151, 0.0
    %v1153 = vcombine.low %v270, %v272
    %v1155 = vunpack.c.l.s4 1934713408
    %v1156 = vunpack.c.0.s8 %v1155
    %v1157 = vlaneseq
    %v1158 = vshrl.u32 %v1157, 7
    %v1159 = vsub.s32 %v1156, %v1158
    %v1160 = vrot.slane %v1153, %v1159
    %v1161 = vcombine.high %v1160, 0.0
    %v1162 = vcombine.low %v274, %v276
    %v1164 = vunpack.c.l.s4 1934713408
    %v1165 = vunpack.c.0.s8 %v1164
    %v1166 = vlaneseq
    %v1167 = vshrl.u32 %v1166, 7
    %v1168 = vsub.s32 %v1165, %v1167
    %v1169 = vrot.slane %v1162, %v1168
    %v1170 = vcombine.high %v1169, 0.0
    %v1171 = vcombine.low %v22, %v282
    %v1173 = vunpack.c.l.s4 1934713408
    %v1174 = vunpack.c.0.s8 %v1173
    %v1175 = vlaneseq
    %v1176 = vshrl.u32 %v1175, 7
    %v1177 = vsub.s32 %v1174, %v1176
    %v1178 = vrot.slane %v1171, %v1177
    %v1179 = vcombine.high %v1178, 0.0
    %v1180 = vcombine.low %v286, %v290
    %v1182 = vunpack.c.l.s4 1934713408
    %v1183 = vunpack.c.0.s8 %v1182
    %v1184 = vlaneseq
    %v1185 = vshrl.u32 %v1184, 7
    %v1186 = vsub.s32 %v1183, %v1185
    %v1187 = vrot.slane %v1180, %v1186
    %v1188 = vcombine.high %v1187, 0.0
    %v1189 = vcombine.low %v294, %v298
    %v1191 = vunpack.c.l.s4 1934713408
    %v1192 = vunpack.c.0.s8 %v1191
    %v1193 = vlaneseq
    %v1194 = vshrl.u32 %v1193, 7
    %v1195 = vsub.s32 %v1192, %v1194
    %v1196 = vrot.slane %v1189, %v1195
    %v1197 = vcombine.high %v1196, 0.0
    %v1198 = vcombine.low %v302, %v306
    %v1200 = vunpack.c.l.s4 1934713408
    %v1201 = vunpack.c.0.s8 %v1200
    %v1202 = vlaneseq
    %v1203 = vshrl.u32 %v1202, 7
    %v1204 = vsub.s32 %v1201, %v1203
    %v1205 = vrot.slane %v1198, %v1204
    %v1206 = vcombine.high %v1205, 0.0
    %v1207 = vcombine.low %v310, %v314
    %v1209 = vunpack.c.l.s4 1934713408
    %v1210 = vunpack.c.0.s8 %v1209
    %v1211 = vlaneseq
    %v1212 = vshrl.u32 %v1211, 7
    %v1213 = vsub.s32 %v1210, %v1212
    %v1214 = vrot.slane %v1207, %v1213
    %v1215 = vcombine.high %v1214, 0.0
    %v1216 = vcombine.low %v318, %v322
    %v1218 = vunpack.c.l.s4 1934713408
    %v1219 = vunpack.c.0.s8 %v1218
    %v1220 = vlaneseq
    %v1221 = vshrl.u32 %v1220, 7
    %v1222 = vsub.s32 %v1219, %v1221
    %v1223 = vrot.slane %v1216, %v1222
    %v1224 = vcombine.high %v1223, 0.0
    %v1225 = vcombine.low %v326, %v330
    %v1227 = vunpack.c.l.s4 1934713408
    %v1228 = vunpack.c.0.s8 %v1227
    %v1229 = vlaneseq
    %v1230 = vshrl.u32 %v1229, 7
    %v1231 = vsub.s32 %v1228, %v1230
    %v1232 = vrot.slane %v1225, %v1231
    %v1233 = vcombine.high %v1232, 0.0
    %v1234 = vcombine.low %v334, %v338
    %v1236 = vunpack.c.l.s4 1934713408
    %v1237 = vunpack.c.0.s8 %v1236
    %v1238 = vlaneseq
    %v1239 = vshrl.u32 %v1238, 7
    %v1240 = vsub.s32 %v1237, %v1239
    %v1241 = vrot.slane %v1234, %v1240
    %v1242 = vcombine.high %v1241, 0.0
    %v1243 = vcombine.low %v342, %v346
    %v1245 = vunpack.c.l.s4 1934713408
    %v1246 = vunpack.c.0.s8 %v1245
    %v1247 = vlaneseq
    %v1248 = vshrl.u32 %v1247, 7
    %v1249 = vsub.s32 %v1246, %v1248
    %v1250 = vrot.slane %v1243, %v1249
    %v1251 = vcombine.high %v1250, 0.0
    %v1252 = vcombine.low %v350, %v354
    %v1254 = vunpack.c.l.s4 1934713408
    %v1255 = vunpack.c.0.s8 %v1254
    %v1256 = vlaneseq
    %v1257 = vshrl.u32 %v1256, 7
    %v1258 = vsub.s32 %v1255, %v1257
    %v1259 = vrot.slane %v1252, %v1258
    %v1260 = vcombine.high %v1259, 0.0
    %v1261 = vcombine.low %v358, %v362
    %v1263 = vunpack.c.l.s4 1934713408
    %v1264 = vunpack.c.0.s8 %v1263
    %v1265 = vlaneseq
    %v1266 = vshrl.u32 %v1265, 7
    %v1267 = vsub.s32 %v1264, %v1266
    %v1268 = vrot.slane %v1261, %v1267
    %v1269 = vcombine.high %v1268, 0.0
    %v1270 = vcombine.low %v366, %v370
    %v1272 = vunpack.c.l.s4 1934713408
    %v1273 = vunpack.c.0.s8 %v1272
    %v1274 = vlaneseq
    %v1275 = vshrl.u32 %v1274, 7
    %v1276 = vsub.s32 %v1273, %v1275
    %v1277 = vrot.slane %v1270, %v1276
    %v1278 = vcombine.high %v1277, 0.0
    %v1279 = vcombine.low %v374, %v378
    %v1281 = vunpack.c.l.s4 1934713408
    %v1282 = vunpack.c.0.s8 %v1281
    %v1283 = vlaneseq
    %v1284 = vshrl.u32 %v1283, 7
    %v1285 = vsub.s32 %v1282, %v1284
    %v1286 = vrot.slane %v1279, %v1285
    %v1287 = vcombine.high %v1286, 0.0
    %v1288 = vcombine.low %v382, %v386
    %v1290 = vunpack.c.l.s4 1934713408
    %v1291 = vunpack.c.0.s8 %v1290
    %v1292 = vlaneseq
    %v1293 = vshrl.u32 %v1292, 7
    %v1294 = vsub.s32 %v1291, %v1293
    %v1295 = vrot.slane %v1288, %v1294
    %v1296 = vcombine.high %v1295, 0.0
    %v1297 = vcombine.low %v390, %v394
    %v1299 = vunpack.c.l.s4 1934713408
    %v1300 = vunpack.c.0.s8 %v1299
    %v1301 = vlaneseq
    %v1302 = vshrl.u32 %v1301, 7
    %v1303 = vsub.s32 %v1300, %v1302
    %v1304 = vrot.slane %v1297, %v1303
    %v1305 = vcombine.high %v1304, 0.0
    %v1306 = vcombine.low %v398, %v402
    %v1308 = vunpack.c.l.s4 1934713408
    %v1309 = vunpack.c.0.s8 %v1308
    %v1310 = vlaneseq
    %v1311 = vshrl.u32 %v1310, 7
    %v1312 = vsub.s32 %v1309, %v1311
    %v1313 = vrot.slane %v1306, %v1312
    %v1314 = vcombine.high %v1313, 0.0
    %v1315 = vcombine.low %v279, %v283
    %v1317 = vunpack.c.l.s4 1934713408
    %v1318 = vunpack.c.0.s8 %v1317
    %v1319 = vlaneseq
    %v1320 = vshrl.u32 %v1319, 7
    %v1321 = vsub.s32 %v1318, %v1320
    %v1322 = vrot.slane %v1315, %v1321
    %v1323 = vcombine.high %v1322, 0.0
    %v1324 = vcombine.low %v287, %v291
    %v1326 = vunpack.c.l.s4 1934713408
    %v1327 = vunpack.c.0.s8 %v1326
    %v1328 = vlaneseq
    %v1329 = vshrl.u32 %v1328, 7
    %v1330 = vsub.s32 %v1327, %v1329
    %v1331 = vrot.slane %v1324, %v1330
    %v1332 = vcombine.high %v1331, 0.0
    %v1333 = vcombine.low %v295, %v299
    %v1335 = vunpack.c.l.s4 1934713408
    %v1336 = vunpack.c.0.s8 %v1335
    %v1337 = vlaneseq
    %v1338 = vshrl.u32 %v1337, 7
    %v1339 = vsub.s32 %v1336, %v1338
    %v1340 = vrot.slane %v1333, %v1339
    %v1341 = vcombine.high %v1340, 0.0
    %v1342 = vcombine.low %v303, %v307
    %v1344 = vunpack.c.l.s4 1934713408
    %v1345 = vunpack.c.0.s8 %v1344
    %v1346 = vlaneseq
    %v1347 = vshrl.u32 %v1346, 7
    %v1348 = vsub.s32 %v1345, %v1347
    %v1349 = vrot.slane %v1342, %v1348
    %v1350 = vcombine.high %v1349, 0.0
    %v1351 = vcombine.low %v311, %v315
    %v1353 = vunpack.c.l.s4 1934713408
    %v1354 = vunpack.c.0.s8 %v1353
    %v1355 = vlaneseq
    %v1356 = vshrl.u32 %v1355, 7
    %v1357 = vsub.s32 %v1354, %v1356
    %v1358 = vrot.slane %v1351, %v1357
    %v1359 = vcombine.high %v1358, 0.0
    %v1360 = vcombine.low %v319, %v323
    %v1362 = vunpack.c.l.s4 1934713408
    %v1363 = vunpack.c.0.s8 %v1362
    %v1364 = vlaneseq
    %v1365 = vshrl.u32 %v1364, 7
    %v1366 = vsub.s32 %v1363, %v1365
    %v1367 = vrot.slane %v1360, %v1366
    %v1368 = vcombine.high %v1367, 0.0
    %v1369 = vcombine.low %v327, %v331
    %v1371 = vunpack.c.l.s4 1934713408
    %v1372 = vunpack.c.0.s8 %v1371
    %v1373 = vlaneseq
    %v1374 = vshrl.u32 %v1373, 7
    %v1375 = vsub.s32 %v1372, %v1374
    %v1376 = vrot.slane %v1369, %v1375
    %v1377 = vcombine.high %v1376, 0.0
    %v1378 = vcombine.low %v335, %v339
    %v1380 = vunpack.c.l.s4 1934713408
    %v1381 = vunpack.c.0.s8 %v1380
    %v1382 = vlaneseq
    %v1383 = vshrl.u32 %v1382, 7
    %v1384 = vsub.s32 %v1381, %v1383
    %v1385 = vrot.slane %v1378, %v1384
    %v1386 = vcombine.high %v1385, 0.0
    %v1387 = vcombine.low %v343, %v347
    %v1389 = vunpack.c.l.s4 1934713408
    %v1390 = vunpack.c.0.s8 %v1389
    %v1391 = vlaneseq
    %v1392 = vshrl.u32 %v1391, 7
    %v1393 = vsub.s32 %v1390, %v1392
    %v1394 = vrot.slane %v1387, %v1393
    %v1395 = vcombine.high %v1394, 0.0
    %v1396 = vcombine.low %v351, %v355
    %v1398 = vunpack.c.l.s4 1934713408
    %v1399 = vunpack.c.0.s8 %v1398
    %v1400 = vlaneseq
    %v1401 = vshrl.u32 %v1400, 7
    %v1402 = vsub.s32 %v1399, %v1401
    %v1403 = vrot.slane %v1396, %v1402
    %v1404 = vcombine.high %v1403, 0.0
    %v1405 = vcombine.low %v359, %v363
    %v1407 = vunpack.c.l.s4 1934713408
    %v1408 = vunpack.c.0.s8 %v1407
    %v1409 = vlaneseq
    %v1410 = vshrl.u32 %v1409, 7
    %v1411 = vsub.s32 %v1408, %v1410
    %v1412 = vrot.slane %v1405, %v1411
    %v1413 = vcombine.high %v1412, 0.0
    %v1414 = vcombine.low %v367, %v371
    %v1416 = vunpack.c.l.s4 1934713408
    %v1417 = vunpack.c.0.s8 %v1416
    %v1418 = vlaneseq
    %v1419 = vshrl.u32 %v1418, 7
    %v1420 = vsub.s32 %v1417, %v1419
    %v1421 = vrot.slane %v1414, %v1420
    %v1422 = vcombine.high %v1421, 0.0
    %v1423 = vcombine.low %v375, %v379
    %v1425 = vunpack.c.l.s4 1934713408
    %v1426 = vunpack.c.0.s8 %v1425
    %v1427 = vlaneseq
    %v1428 = vshrl.u32 %v1427, 7
    %v1429 = vsub.s32 %v1426, %v1428
    %v1430 = vrot.slane %v1423, %v1429
    %v1431 = vcombine.high %v1430, 0.0
    %v1432 = vcombine.low %v383, %v387
    %v1434 = vunpack.c.l.s4 1934713408
    %v1435 = vunpack.c.0.s8 %v1434
    %v1436 = vlaneseq
    %v1437 = vshrl.u32 %v1436, 7
    %v1438 = vsub.s32 %v1435, %v1437
    %v1439 = vrot.slane %v1432, %v1438
    %v1440 = vcombine.high %v1439, 0.0
    %v1441 = vcombine.low %v391, %v395
    %v1443 = vunpack.c.l.s4 1934713408
    %v1444 = vunpack.c.0.s8 %v1443
    %v1445 = vlaneseq
    %v1446 = vshrl.u32 %v1445, 7
    %v1447 = vsub.s32 %v1444, %v1446
    %v1448 = vrot.slane %v1441, %v1447
    %v1449 = vcombine.high %v1448, 0.0
    %v1450 = vcombine.low %v399, %v403
    %v1452 = vunpack.c.l.s4 1934713408
    %v1453 = vunpack.c.0.s8 %v1452
    %v1454 = vlaneseq
    %v1455 = vshrl.u32 %v1454, 7
    %v1456 = vsub.s32 %v1453, %v1455
    %v1457 = vrot.slane %v1450, %v1456
    %v1458 = vcombine.high %v1457, 0.0
    %v1459 = vcombine.low %v405, %v407
    %v1461 = vunpack.c.l.s4 1934713408
    %v1462 = vunpack.c.0.s8 %v1461
    %v1463 = vlaneseq
    %v1464 = vshrl.u32 %v1463, 7
    %v1465 = vsub.s32 %v1462, %v1464
    %v1466 = vrot.slane %v1459, %v1465
    %v1467 = vcombine.high %v1466, 0.0
    %v1468 = vcombine.low %v409, %v411
    %v1470 = vunpack.c.l.s4 1934713408
    %v1471 = vunpack.c.0.s8 %v1470
    %v1472 = vlaneseq
    %v1473 = vshrl.u32 %v1472, 7
    %v1474 = vsub.s32 %v1471, %v1473
    %v1475 = vrot.slane %v1468, %v1474
    %v1476 = vcombine.high %v1475, 0.0
    %v1477 = vcombine.low %v413, %v415
    %v1479 = vunpack.c.l.s4 1934713408
    %v1480 = vunpack.c.0.s8 %v1479
    %v1481 = vlaneseq
    %v1482 = vshrl.u32 %v1481, 7
    %v1483 = vsub.s32 %v1480, %v1482
    %v1484 = vrot.slane %v1477, %v1483
    %v1485 = vcombine.high %v1484, 0.0
    %v1486 = vcombine.low %v417, %v419
    %v1488 = vunpack.c.l.s4 1934713408
    %v1489 = vunpack.c.0.s8 %v1488
    %v1490 = vlaneseq
    %v1491 = vshrl.u32 %v1490, 7
    %v1492 = vsub.s32 %v1489, %v1491
    %v1493 = vrot.slane %v1486, %v1492
    %v1494 = vcombine.high %v1493, 0.0
    %v1495 = vcombine.low %v421, %v423
    %v1497 = vunpack.c.l.s4 1934713408
    %v1498 = vunpack.c.0.s8 %v1497
    %v1499 = vlaneseq
    %v1500 = vshrl.u32 %v1499, 7
    %v1501 = vsub.s32 %v1498, %v1500
    %v1502 = vrot.slane %v1495, %v1501
    %v1503 = vcombine.high %v1502, 0.0
    %v1504 = vcombine.low %v425, %v427
    %v1506 = vunpack.c.l.s4 1934713408
    %v1507 = vunpack.c.0.s8 %v1506
    %v1508 = vlaneseq
    %v1509 = vshrl.u32 %v1508, 7
    %v1510 = vsub.s32 %v1507, %v1509
    %v1511 = vrot.slane %v1504, %v1510
    %v1512 = vcombine.high %v1511, 0.0
    %v1513 = vcombine.low %v429, %v431
    %v1515 = vunpack.c.l.s4 1934713408
    %v1516 = vunpack.c.0.s8 %v1515
    %v1517 = vlaneseq
    %v1518 = vshrl.u32 %v1517, 7
    %v1519 = vsub.s32 %v1516, %v1518
    %v1520 = vrot.slane %v1513, %v1519
    %v1521 = vcombine.high %v1520, 0.0
    %v1522 = vcombine.low %v433, %v435
    %v1524 = vunpack.c.l.s4 1934713408
    %v1525 = vunpack.c.0.s8 %v1524
    %v1526 = vlaneseq
    %v1527 = vshrl.u32 %v1526, 7
    %v1528 = vsub.s32 %v1525, %v1527
    %v1529 = vrot.slane %v1522, %v1528
    %v1530 = vcombine.high %v1529, 0.0
    %v1531 = vcombine.low %v437, %v439
    %v1533 = vunpack.c.l.s4 1934713408
    %v1534 = vunpack.c.0.s8 %v1533
    %v1535 = vlaneseq
    %v1536 = vshrl.u32 %v1535, 7
    %v1537 = vsub.s32 %v1534, %v1536
    %v1538 = vrot.slane %v1531, %v1537
    %v1539 = vcombine.high %v1538, 0.0
    %v1540 = vcombine.low %v441, %v443
    %v1542 = vunpack.c.l.s4 1934713408
    %v1543 = vunpack.c.0.s8 %v1542
    %v1544 = vlaneseq
    %v1545 = vshrl.u32 %v1544, 7
    %v1546 = vsub.s32 %v1543, %v1545
    %v1547 = vrot.slane %v1540, %v1546
    %v1548 = vcombine.high %v1547, 0.0
    %v1549 = vcombine.low %v445, %v447
    %v1551 = vunpack.c.l.s4 1934713408
    %v1552 = vunpack.c.0.s8 %v1551
    %v1553 = vlaneseq
    %v1554 = vshrl.u32 %v1553, 7
    %v1555 = vsub.s32 %v1552, %v1554
    %v1556 = vrot.slane %v1549, %v1555
    %v1557 = vcombine.high %v1556, 0.0
    %v1558 = vcombine.low %v449, %v451
    %v1560 = vunpack.c.l.s4 1934713408
    %v1561 = vunpack.c.0.s8 %v1560
    %v1562 = vlaneseq
    %v1563 = vshrl.u32 %v1562, 7
    %v1564 = vsub.s32 %v1561, %v1563
    %v1565 = vrot.slane %v1558, %v1564
    %v1566 = vcombine.high %v1565, 0.0
    %v1567 = vcombine.low %v453, %v455
    %v1569 = vunpack.c.l.s4 1934713408
    %v1570 = vunpack.c.0.s8 %v1569
    %v1571 = vlaneseq
    %v1572 = vshrl.u32 %v1571, 7
    %v1573 = vsub.s32 %v1570, %v1572
    %v1574 = vrot.slane %v1567, %v1573
    %v1575 = vcombine.high %v1574, 0.0
    %v1576 = vcombine.low %v457, %v459
    %v1578 = vunpack.c.l.s4 1934713408
    %v1579 = vunpack.c.0.s8 %v1578
    %v1580 = vlaneseq
    %v1581 = vshrl.u32 %v1580, 7
    %v1582 = vsub.s32 %v1579, %v1581
    %v1583 = vrot.slane %v1576, %v1582
    %v1584 = vcombine.high %v1583, 0.0
    %v1585 = vcombine.low %v461, %v463
    %v1587 = vunpack.c.l.s4 1934713408
    %v1588 = vunpack.c.0.s8 %v1587
    %v1589 = vlaneseq
    %v1590 = vshrl.u32 %v1589, 7
    %v1591 = vsub.s32 %v1588, %v1590
    %v1592 = vrot.slane %v1585, %v1591
    %v1593 = vcombine.high %v1592, 0.0
    %v1594 = vcombine.low %v465, %v467
    %v1596 = vunpack.c.l.s4 1934713408
    %v1597 = vunpack.c.0.s8 %v1596
    %v1598 = vlaneseq
    %v1599 = vshrl.u32 %v1598, 7
    %v1600 = vsub.s32 %v1597, %v1599
    %v1601 = vrot.slane %v1594, %v1600
    %v1602 = vcombine.high %v1601, 0.0
    %v1603 = vcombine.low %v469, %v471
    %v1605 = vunpack.c.l.s4 1934713408
    %v1606 = vunpack.c.0.s8 %v1605
    %v1607 = vlaneseq
    %v1608 = vshrl.u32 %v1607, 7
    %v1609 = vsub.s32 %v1606, %v1608
    %v1610 = vrot.slane %v1603, %v1609
    %v1611 = vcombine.high %v1610, 0.0
    %v1612 = vcombine.low %v473, %v475
    %v1614 = vunpack.c.l.s4 1934713408
    %v1615 = vunpack.c.0.s8 %v1614
    %v1616 = vlaneseq
    %v1617 = vshrl.u32 %v1616, 7
    %v1618 = vsub.s32 %v1615, %v1617
    %v1619 = vrot.slane %v1612, %v1618
    %v1620 = vcombine.high %v1619, 0.0
    %v1621 = vcombine.low %v477, %v479
    %v1623 = vunpack.c.l.s4 1934713408
    %v1624 = vunpack.c.0.s8 %v1623
    %v1625 = vlaneseq
    %v1626 = vshrl.u32 %v1625, 7
    %v1627 = vsub.s32 %v1624, %v1626
    %v1628 = vrot.slane %v1621, %v1627
    %v1629 = vcombine.high %v1628, 0.0
    %v1630 = vcombine.low %v481, %v483
    %v1632 = vunpack.c.l.s4 1934713408
    %v1633 = vunpack.c.0.s8 %v1632
    %v1634 = vlaneseq
    %v1635 = vshrl.u32 %v1634, 7
    %v1636 = vsub.s32 %v1633, %v1635
    %v1637 = vrot.slane %v1630, %v1636
    %v1638 = vcombine.high %v1637, 0.0
    %v1639 = vcombine.low %v485, %v487
    %v1641 = vunpack.c.l.s4 1934713408
    %v1642 = vunpack.c.0.s8 %v1641
    %v1643 = vlaneseq
    %v1644 = vshrl.u32 %v1643, 7
    %v1645 = vsub.s32 %v1642, %v1644
    %v1646 = vrot.slane %v1639, %v1645
    %v1647 = vcombine.high %v1646, 0.0
    %v1648 = vcombine.low %v489, %v491
    %v1650 = vunpack.c.l.s4 1934713408
    %v1651 = vunpack.c.0.s8 %v1650
    %v1652 = vlaneseq
    %v1653 = vshrl.u32 %v1652, 7
    %v1654 = vsub.s32 %v1651, %v1653
    %v1655 = vrot.slane %v1648, %v1654
    %v1656 = vcombine.high %v1655, 0.0
    %v1657 = vcombine.low %v493, %v495
    %v1659 = vunpack.c.l.s4 1934713408
    %v1660 = vunpack.c.0.s8 %v1659
    %v1661 = vlaneseq
    %v1662 = vshrl.u32 %v1661, 7
    %v1663 = vsub.s32 %v1660, %v1662
    %v1664 = vrot.slane %v1657, %v1663
    %v1665 = vcombine.high %v1664, 0.0
    %v1666 = vcombine.low %v497, %v499
    %v1668 = vunpack.c.l.s4 1934713408
    %v1669 = vunpack.c.0.s8 %v1668
    %v1670 = vlaneseq
    %v1671 = vshrl.u32 %v1670, 7
    %v1672 = vsub.s32 %v1669, %v1671
    %v1673 = vrot.slane %v1666, %v1672
    %v1674 = vcombine.high %v1673, 0.0
    %v1675 = vcombine.low %v501, %v503
    %v1677 = vunpack.c.l.s4 1934713408
    %v1678 = vunpack.c.0.s8 %v1677
    %v1679 = vlaneseq
    %v1680 = vshrl.u32 %v1679, 7
    %v1681 = vsub.s32 %v1678, %v1680
    %v1682 = vrot.slane %v1675, %v1681
    %v1683 = vcombine.high %v1682, 0.0
    %v1684 = vcombine.low %v505, %v507
    %v1686 = vunpack.c.l.s4 1934713408
    %v1687 = vunpack.c.0.s8 %v1686
    %v1688 = vlaneseq
    %v1689 = vshrl.u32 %v1688, 7
    %v1690 = vsub.s32 %v1687, %v1689
    %v1691 = vrot.slane %v1684, %v1690
    %v1692 = vcombine.high %v1691, 0.0
    %v1693 = vcombine.low %v509, %v511
    %v1695 = vunpack.c.l.s4 1934713408
    %v1696 = vunpack.c.0.s8 %v1695
    %v1697 = vlaneseq
    %v1698 = vshrl.u32 %v1697, 7
    %v1699 = vsub.s32 %v1696, %v1698
    %v1700 = vrot.slane %v1693, %v1699
    %v1701 = vcombine.high %v1700, 0.0
    %v1702 = vcombine.low %v513, %v515
    %v1704 = vunpack.c.l.s4 1934713408
    %v1705 = vunpack.c.0.s8 %v1704
    %v1706 = vlaneseq
    %v1707 = vshrl.u32 %v1706, 7
    %v1708 = vsub.s32 %v1705, %v1707
    %v1709 = vrot.slane %v1702, %v1708
    %v1710 = vcombine.high %v1709, 0.0
    %v1711 = vcombine.low %v517, %v519
    %v1713 = vunpack.c.l.s4 1934713408
    %v1714 = vunpack.c.0.s8 %v1713
    %v1715 = vlaneseq
    %v1716 = vshrl.u32 %v1715, 7
    %v1717 = vsub.s32 %v1714, %v1716
    %v1718 = vrot.slane %v1711, %v1717
    %v1719 = vcombine.high %v1718, 0.0
    %v1720 = vcombine.low %v521, %v523
    %v1722 = vunpack.c.l.s4 1934713408
    %v1723 = vunpack.c.0.s8 %v1722
    %v1724 = vlaneseq
    %v1725 = vshrl.u32 %v1724, 7
    %v1726 = vsub.s32 %v1723, %v1725
    %v1727 = vrot.slane %v1720, %v1726
    %v1728 = vcombine.high %v1727, 0.0
    %v1729 = vcombine.low %v525, %v527
    %v1731 = vunpack.c.l.s4 1934713408
    %v1732 = vunpack.c.0.s8 %v1731
    %v1733 = vlaneseq
    %v1734 = vshrl.u32 %v1733, 7
    %v1735 = vsub.s32 %v1732, %v1734
    %v1736 = vrot.slane %v1729, %v1735
    %v1737 = vcombine.high %v1736, 0.0
    %v1738 = vcombine.low %v529, %v531
    %v1740 = vunpack.c.l.s4 1934713408
    %v1741 = vunpack.c.0.s8 %v1740
    %v1742 = vlaneseq
    %v1743 = vshrl.u32 %v1742, 7
    %v1744 = vsub.s32 %v1741, %v1743
    %v1745 = vrot.slane %v1738, %v1744
    %v1746 = vcombine.high %v1745, 0.0
    %v2003 = vcombine.low %v602, %v611
    %v2004 = vcombine.low %v620, %v629
    %v2006 = vunpack.c.l.s4 1983009808
    %v2007 = vunpack.c.0.s8 %v2006
    %v2008 = vlaneseq
    %v2009 = vshrl.u32 %v2008, 7
    %v2010 = vsub.s32 %v2007, %v2009
    %v2011 = vrot.slane %v2003, %v2010
    %v2013 = vunpack.c.l.s4 1983009808
    %v2014 = vunpack.c.0.s8 %v2013
    %v2015 = vlaneseq
    %v2016 = vshrl.u32 %v2015, 7
    %v2017 = vsub.s32 %v2014, %v2016
    %v2018 = vrot.slane %v2004, %v2017
    %v2019 = vcombine.low %v2011, %v2018
    %v2020 = vcombine.low %v638, %v647
    %v2021 = vcombine.low %v656, %v665
    %v2023 = vunpack.c.l.s4 1983009808
    %v2024 = vunpack.c.0.s8 %v2023
    %v2025 = vlaneseq
    %v2026 = vshrl.u32 %v2025, 7
    %v2027 = vsub.s32 %v2024, %v2026
    %v2028 = vrot.slane %v2020, %v2027
    %v2030 = vunpack.c.l.s4 1983009808
    %v2031 = vunpack.c.0.s8 %v2030
    %v2032 = vlaneseq
    %v2033 = vshrl.u32 %v2032, 7
    %v2034 = vsub.s32 %v2031, %v2033
    %v2035 = vrot.slane %v2021, %v2034
    %v2036 = vcombine.low %v2028, %v2035
    %v2037 = vcombine.low %v674, %v683
    %v2038 = vcombine.low %v692, %v701
    %v2040 = vunpack.c.l.s4 1983009808
    %v2041 = vunpack.c.0.s8 %v2040
    %v2042 = vlaneseq
    %v2043 = vshrl.u32 %v2042, 7
    %v2044 = vsub.s32 %v2041, %v2043
    %v2045 = vrot.slane %v2037, %v2044
    %v2047 = vunpack.c.l.s4 1983009808
    %v2048 = vunpack.c.0.s8 %v2047
    %v2049 = vlaneseq
    %v2050 = vshrl.u32 %v2049, 7
    %v2051 = vsub.s32 %v2048, %v2050
    %v2052 = vrot.slane %v2038, %v2051
    %v2053 = vcombine.low %v2045, %v2052
    %v2054 = vcombine.low %v710, %v719
    %v2055 = vcombine.low %v728, %v737
    %v2057 = vunpack.c.l.s4 1983009808
    %v2058 = vunpack.c.0.s8 %v2057
    %v2059 = vlaneseq
    %v2060 = vshrl.u32 %v2059, 7
    %v2061 = vsub.s32 %v2058, %v2060
    %v2062 = vrot.slane %v2054, %v2061
    %v2064 = vunpack.c.l.s4 1983009808
    %v2065 = vunpack.c.0.s8 %v2064
    %v2066 = vlaneseq
    %v2067 = vshrl.u32 %v2066, 7
    %v2068 = vsub.s32 %v2065, %v2067
    %v2069 = vrot.slane %v2055, %v2068
    %v2070 = vcombine.low %v2062, %v2069
    %v2071 = vcombine.low %v746, %v755
    %v2072 = vcombine.low %v764, %v773
    %v2074 = vunpack.c.l.s4 1983009808
    %v2075 = vunpack.c.0.s8 %v2074
    %v2076 = vlaneseq
    %v2077 = vshrl.u32 %v2076, 7
    %v2078 = vsub.s32 %v2075, %v2077
    %v2079 = vrot.slane %v2071, %v2078
    %v2081 = vunpack.c.l.s4 1983009808
    %v2082 = vunpack.c.0.s8 %v2081
    %v2083 = vlaneseq
    %v2084 = vshrl.u32 %v2083, 7
    %v2085 = vsub.s32 %v2082, %v2084
    %v2086 = vrot.slane %v2072, %v2085
    %v2087 = vcombine.low %v2079, %v2086
    %v2088 = vcombine.low %v782, %v791
    %v2089 = vcombine.low %v800, %v809
    %v2091 = vunpack.c.l.s4 1983009808
    %v2092 = vunpack.c.0.s8 %v2091
    %v2093 = vlaneseq
    %v2094 = vshrl.u32 %v2093, 7
    %v2095 = vsub.s32 %v2092, %v2094
    %v2096 = vrot.slane %v2088, %v2095
    %v2098 = vunpack.c.l.s4 1983009808
    %v2099 = vunpack.c.0.s8 %v2098
    %v2100 = vlaneseq
    %v2101 = vshrl.u32 %v2100, 7
    %v2102 = vsub.s32 %v2099, %v2101
    %v2103 = vrot.slane %v2089, %v2102
    %v2104 = vcombine.low %v2096, %v2103
    %v2105 = vcombine.low %v818, %v827
    %v2106 = vcombine.low %v836, %v845
    %v2108 = vunpack.c.l.s4 1983009808
    %v2109 = vunpack.c.0.s8 %v2108
    %v2110 = vlaneseq
    %v2111 = vshrl.u32 %v2110, 7
    %v2112 = vsub.s32 %v2109, %v2111
    %v2113 = vrot.slane %v2105, %v2112
    %v2115 = vunpack.c.l.s4 1983009808
    %v2116 = vunpack.c.0.s8 %v2115
    %v2117 = vlaneseq
    %v2118 = vshrl.u32 %v2117, 7
    %v2119 = vsub.s32 %v2116, %v2118
    %v2120 = vrot.slane %v2106, %v2119
    %v2121 = vcombine.low %v2113, %v2120
    %v2122 = vcombine.low %v854, %v863
    %v2123 = vcombine.low %v872, %v881
    %v2125 = vunpack.c.l.s4 1983009808
    %v2126 = vunpack.c.0.s8 %v2125
    %v2127 = vlaneseq
    %v2128 = vshrl.u32 %v2127, 7
    %v2129 = vsub.s32 %v2126, %v2128
    %v2130 = vrot.slane %v2122, %v2129
    %v2132 = vunpack.c.l.s4 1983009808
    %v2133 = vunpack.c.0.s8 %v2132
    %v2134 = vlaneseq
    %v2135 = vshrl.u32 %v2134, 7
    %v2136 = vsub.s32 %v2133, %v2135
    %v2137 = vrot.slane %v2123, %v2136
    %v2138 = vcombine.low %v2130, %v2137
    %v2139 = vcombine.low %v890, %v899
    %v2140 = vcombine.low %v908, %v917
    %v2142 = vunpack.c.l.s4 1983009808
    %v2143 = vunpack.c.0.s8 %v2142
    %v2144 = vlaneseq
    %v2145 = vshrl.u32 %v2144, 7
    %v2146 = vsub.s32 %v2143, %v2145
    %v2147 = vrot.slane %v2139, %v2146
    %v2149 = vunpack.c.l.s4 1983009808
    %v2150 = vunpack.c.0.s8 %v2149
    %v2151 = vlaneseq
    %v2152 = vshrl.u32 %v2151, 7
    %v2153 = vsub.s32 %v2150, %v2152
    %v2154 = vrot.slane %v2140, %v2153
    %v2155 = vcombine.low %v2147, %v2154
    %v2156 = vcombine.low %v926, %v935
    %v2157 = vcombine.low %v944, %v953
    %v2159 = vunpack.c.l.s4 1983009808
    %v2160 = vunpack.c.0.s8 %v2159
    %v2161 = vlaneseq
    %v2162 = vshrl.u32 %v2161, 7
    %v2163 = vsub.s32 %v2160, %v2162
    %v2164 = vrot.slane %v2156, %v2163
    %v2166 = vunpack.c.l.s4 1983009808
    %v2167 = vunpack.c.0.s8 %v2166
    %v2168 = vlaneseq
    %v2169 = vshrl.u32 %v2168, 7
    %v2170 = vsub.s32 %v2167, %v2169
    %v2171 = vrot.slane %v2157, %v2170
    %v2172 = vcombine.low %v2164, %v2171
    %v2173 = vcombine.low %v962, %v971
    %v2174 = vcombine.low %v980, %v989
    %v2176 = vunpack.c.l.s4 1983009808
    %v2177 = vunpack.c.0.s8 %v2176
    %v2178 = vlaneseq
    %v2179 = vshrl.u32 %v2178, 7
    %v2180 = vsub.s32 %v2177, %v2179
    %v2181 = vrot.slane %v2173, %v2180
    %v2183 = vunpack.c.l.s4 1983009808
    %v2184 = vunpack.c.0.s8 %v2183
    %v2185 = vlaneseq
    %v2186 = vshrl.u32 %v2185, 7
    %v2187 = vsub.s32 %v2184, %v2186
    %v2188 = vrot.slane %v2174, %v2187
    %v2189 = vcombine.low %v2181, %v2188
    %v2190 = vcombine.low %v998, %v1007
    %v2191 = vcombine.low %v1016, %v1025
    %v2193 = vunpack.c.l.s4 1983009808
    %v2194 = vunpack.c.0.s8 %v2193
    %v2195 = vlaneseq
    %v2196 = vshrl.u32 %v2195, 7
    %v2197 = vsub.s32 %v2194, %v2196
    %v2198 = vrot.slane %v2190, %v2197
    %v2200 = vunpack.c.l.s4 1983009808
    %v2201 = vunpack.c.0.s8 %v2200
    %v2202 = vlaneseq
    %v2203 = vshrl.u32 %v2202, 7
    %v2204 = vsub.s32 %v2201, %v2203
    %v2205 = vrot.slane %v2191, %v2204
    %v2206 = vcombine.low %v2198, %v2205
    %v2207 = vcombine.low %v1034, %v1043
    %v2208 = vcombine.low %v1052, %v1061
    %v2210 = vunpack.c.l.s4 1983009808
    %v2211 = vunpack.c.0.s8 %v2210
    %v2212 = vlaneseq
    %v2213 = vshrl.u32 %v2212, 7
    %v2214 = vsub.s32 %v2211, %v2213
    %v2215 = vrot.slane %v2207, %v2214
    %v2217 = vunpack.c.l.s4 1983009808
    %v2218 = vunpack.c.0.s8 %v2217
    %v2219 = vlaneseq
    %v2220 = vshrl.u32 %v2219, 7
    %v2221 = vsub.s32 %v2218, %v2220
    %v2222 = vrot.slane %v2208, %v2221
    %v2223 = vcombine.low %v2215, %v2222
    %v2224 = vcombine.low %v1070, %v1079
    %v2225 = vcombine.low %v1088, %v1097
    %v2227 = vunpack.c.l.s4 1983009808
    %v2228 = vunpack.c.0.s8 %v2227
    %v2229 = vlaneseq
    %v2230 = vshrl.u32 %v2229, 7
    %v2231 = vsub.s32 %v2228, %v2230
    %v2232 = vrot.slane %v2224, %v2231
    %v2234 = vunpack.c.l.s4 1983009808
    %v2235 = vunpack.c.0.s8 %v2234
    %v2236 = vlaneseq
    %v2237 = vshrl.u32 %v2236, 7
    %v2238 = vsub.s32 %v2235, %v2237
    %v2239 = vrot.slane %v2225, %v2238
    %v2240 = vcombine.low %v2232, %v2239
    %v2241 = vcombine.low %v1106, %v1115
    %v2242 = vcombine.low %v1124, %v1133
    %v2244 = vunpack.c.l.s4 1983009808
    %v2245 = vunpack.c.0.s8 %v2244
    %v2246 = vlaneseq
    %v2247 = vshrl.u32 %v2246, 7
    %v2248 = vsub.s32 %v2245, %v2247
    %v2249 = vrot.slane %v2241, %v2248
    %v2251 = vunpack.c.l.s4 1983009808
    %v2252 = vunpack.c.0.s8 %v2251
    %v2253 = vlaneseq
    %v2254 = vshrl.u32 %v2253, 7
    %v2255 = vsub.s32 %v2252, %v2254
    %v2256 = vrot.slane %v2242, %v2255
    %v2257 = vcombine.low %v2249, %v2256
    %v2258 = vcombine.low %v1142, %v1151
    %v2259 = vcombine.low %v1160, %v1169
    %v2261 = vunpack.c.l.s4 1983009808
    %v2262 = vunpack.c.0.s8 %v2261
    %v2263 = vlaneseq
    %v2264 = vshrl.u32 %v2263, 7
    %v2265 = vsub.s32 %v2262, %v2264
    %v2266 = vrot.slane %v2258, %v2265
    %v2268 = vunpack.c.l.s4 1983009808
    %v2269 = vunpack.c.0.s8 %v2268
    %v2270 = vlaneseq
    %v2271 = vshrl.u32 %v2270, 7
    %v2272 = vsub.s32 %v2269, %v2271
    %v2273 = vrot.slane %v2259, %v2272
    %v2274 = vcombine.low %v2266, %v2273
    %v2275 = vcombine.low %v1178, %v1187
    %v2276 = vcombine.low %v1196, %v1205
    %v2278 = vunpack.c.l.s4 1983009808
    %v2279 = vunpack.c.0.s8 %v2278
    %v2280 = vlaneseq
    %v2281 = vshrl.u32 %v2280, 7
    %v2282 = vsub.s32 %v2279, %v2281
    %v2283 = vrot.slane %v2275, %v2282
    %v2285 = vunpack.c.l.s4 1983009808
    %v2286 = vunpack.c.0.s8 %v2285
    %v2287 = vlaneseq
    %v2288 = vshrl.u32 %v2287, 7
    %v2289 = vsub.s32 %v2286, %v2288
    %v2290 = vrot.slane %v2276, %v2289
    %v2291 = vcombine.low %v2283, %v2290
    %v2292 = vcombine.low %v1214, %v1223
    %v2293 = vcombine.low %v1232, %v1241
    %v2295 = vunpack.c.l.s4 1983009808
    %v2296 = vunpack.c.0.s8 %v2295
    %v2297 = vlaneseq
    %v2298 = vshrl.u32 %v2297, 7
    %v2299 = vsub.s32 %v2296, %v2298
    %v2300 = vrot.slane %v2292, %v2299
    %v2302 = vunpack.c.l.s4 1983009808
    %v2303 = vunpack.c.0.s8 %v2302
    %v2304 = vlaneseq
    %v2305 = vshrl.u32 %v2304, 7
    %v2306 = vsub.s32 %v2303, %v2305
    %v2307 = vrot.slane %v2293, %v2306
    %v2308 = vcombine.low %v2300, %v2307
    %v2309 = vcombine.low %v1250, %v1259
    %v2310 = vcombine.low %v1268, %v1277
    %v2312 = vunpack.c.l.s4 1983009808
    %v2313 = vunpack.c.0.s8 %v2312
    %v2314 = vlaneseq
    %v2315 = vshrl.u32 %v2314, 7
    %v2316 = vsub.s32 %v2313, %v2315
    %v2317 = vrot.slane %v2309, %v2316
    %v2319 = vunpack.c.l.s4 1983009808
    %v2320 = vunpack.c.0.s8 %v2319
    %v2321 = vlaneseq
    %v2322 = vshrl.u32 %v2321, 7
    %v2323 = vsub.s32 %v2320, %v2322
    %v2324 = vrot.slane %v2310, %v2323
    %v2325 = vcombine.low %v2317, %v2324
    %v2326 = vcombine.low %v1286, %v1295
    %v2327 = vcombine.low %v1304, %v1313
    %v2329 = vunpack.c.l.s4 1983009808
    %v2330 = vunpack.c.0.s8 %v2329
    %v2331 = vlaneseq
    %v2332 = vshrl.u32 %v2331, 7
    %v2333 = vsub.s32 %v2330, %v2332
    %v2334 = vrot.slane %v2326, %v2333
    %v2336 = vunpack.c.l.s4 1983009808
    %v2337 = vunpack.c.0.s8 %v2336
    %v2338 = vlaneseq
    %v2339 = vshrl.u32 %v2338, 7
    %v2340 = vsub.s32 %v2337, %v2339
    %v2341 = vrot.slane %v2327, %v2340
    %v2342 = vcombine.low %v2334, %v2341
    %v2343 = vcombine.low %v1322, %v1331
    %v2344 = vcombine.low %v1340, %v1349
    %v2346 = vunpack.c.l.s4 1983009808
    %v2347 = vunpack.c.0.s8 %v2346
    %v2348 = vlaneseq
    %v2349 = vshrl.u32 %v2348, 7
    %v2350 = vsub.s32 %v2347, %v2349
    %v2351 = vrot.slane %v2343, %v2350
    %v2353 = vunpack.c.l.s4 1983009808
    %v2354 = vunpack.c.0.s8 %v2353
    %v2355 = vlaneseq
    %v2356 = vshrl.u32 %v2355, 7
    %v2357 = vsub.s32 %v2354, %v2356
    %v2358 = vrot.slane %v2344, %v2357
    %v2359 = vcombine.low %v2351, %v2358
    %v2360 = vcombine.low %v1358, %v1367
    %v2361 = vcombine.low %v1376, %v1385
    %v2363 = vunpack.c.l.s4 1983009808
    %v2364 = vunpack.c.0.s8 %v2363
    %v2365 = vlaneseq
    %v2366 = vshrl.u32 %v2365, 7
    %v2367 = vsub.s32 %v2364, %v2366
    %v2368 = vrot.slane %v2360, %v2367
    %v2370 = vunpack.c.l.s4 1983009808
    %v2371 = vunpack.c.0.s8 %v2370
    %v2372 = vlaneseq
    %v2373 = vshrl.u32 %v2372, 7
    %v2374 = vsub.s32 %v2371, %v2373
    %v2375 = vrot.slane %v2361, %v2374
    %v2376 = vcombine.low %v2368, %v2375
    %v2377 = vcombine.low %v1394, %v1403
    %v2378 = vcombine.low %v1412, %v1421
    %v2380 = vunpack.c.l.s4 1983009808
    %v2381 = vunpack.c.0.s8 %v2380
    %v2382 = vlaneseq
    %v2383 = vshrl.u32 %v2382, 7
    %v2384 = vsub.s32 %v2381, %v2383
    %v2385 = vrot.slane %v2377, %v2384
    %v2387 = vunpack.c.l.s4 1983009808
    %v2388 = vunpack.c.0.s8 %v2387
    %v2389 = vlaneseq
    %v2390 = vshrl.u32 %v2389, 7
    %v2391 = vsub.s32 %v2388, %v2390
    %v2392 = vrot.slane %v2378, %v2391
    %v2393 = vcombine.low %v2385, %v2392
    %v2394 = vcombine.low %v1430, %v1439
    %v2395 = vcombine.low %v1448, %v1457
    %v2397 = vunpack.c.l.s4 1983009808
    %v2398 = vunpack.c.0.s8 %v2397
    %v2399 = vlaneseq
    %v2400 = vshrl.u32 %v2399, 7
    %v2401 = vsub.s32 %v2398, %v2400
    %v2402 = vrot.slane %v2394, %v2401
    %v2404 = vunpack.c.l.s4 1983009808
    %v2405 = vunpack.c.0.s8 %v2404
    %v2406 = vlaneseq
    %v2407 = vshrl.u32 %v2406, 7
    %v2408 = vsub.s32 %v2405, %v2407
    %v2409 = vrot.slane %v2395, %v2408
    %v2410 = vcombine.low %v2402, %v2409
    %v2411 = vcombine.low %v1466, %v1475
    %v2412 = vcombine.low %v1484, %v1493
    %v2414 = vunpack.c.l.s4 1983009808
    %v2415 = vunpack.c.0.s8 %v2414
    %v2416 = vlaneseq
    %v2417 = vshrl.u32 %v2416, 7
    %v2418 = vsub.s32 %v2415, %v2417
    %v2419 = vrot.slane %v2411, %v2418
    %v2421 = vunpack.c.l.s4 1983009808
    %v2422 = vunpack.c.0.s8 %v2421
    %v2423 = vlaneseq
    %v2424 = vshrl.u32 %v2423, 7
    %v2425 = vsub.s32 %v2422, %v2424
    %v2426 = vrot.slane %v2412, %v2425
    %v2427 = vcombine.low %v2419, %v2426
    %v2428 = vcombine.low %v1502, %v1511
    %v2429 = vcombine.low %v1520, %v1529
    %v2431 = vunpack.c.l.s4 1983009808
    %v2432 = vunpack.c.0.s8 %v2431
    %v2433 = vlaneseq
    %v2434 = vshrl.u32 %v2433, 7
    %v2435 = vsub.s32 %v2432, %v2434
    %v2436 = vrot.slane %v2428, %v2435
    %v2438 = vunpack.c.l.s4 1983009808
    %v2439 = vunpack.c.0.s8 %v2438
    %v2440 = vlaneseq
    %v2441 = vshrl.u32 %v2440, 7
    %v2442 = vsub.s32 %v2439, %v2441
    %v2443 = vrot.slane %v2429, %v2442
    %v2444 = vcombine.low %v2436, %v2443
    %v2445 = vcombine.low %v1538, %v1547
    %v2446 = vcombine.low %v1556, %v1565
    %v2448 = vunpack.c.l.s4 1983009808
    %v2449 = vunpack.c.0.s8 %v2448
    %v2450 = vlaneseq
    %v2451 = vshrl.u32 %v2450, 7
    %v2452 = vsub.s32 %v2449, %v2451
    %v2453 = vrot.slane %v2445, %v2452
    %v2455 = vunpack.c.l.s4 1983009808
    %v2456 = vunpack.c.0.s8 %v2455
    %v2457 = vlaneseq
    %v2458 = vshrl.u32 %v2457, 7
    %v2459 = vsub.s32 %v2456, %v2458
    %v2460 = vrot.slane %v2446, %v2459
    %v2461 = vcombine.low %v2453, %v2460
    %v2462 = vcombine.low %v1574, %v1583
    %v2463 = vcombine.low %v1592, %v1601
    %v2465 = vunpack.c.l.s4 1983009808
    %v2466 = vunpack.c.0.s8 %v2465
    %v2467 = vlaneseq
    %v2468 = vshrl.u32 %v2467, 7
    %v2469 = vsub.s32 %v2466, %v2468
    %v2470 = vrot.slane %v2462, %v2469
    %v2472 = vunpack.c.l.s4 1983009808
    %v2473 = vunpack.c.0.s8 %v2472
    %v2474 = vlaneseq
    %v2475 = vshrl.u32 %v2474, 7
    %v2476 = vsub.s32 %v2473, %v2475
    %v2477 = vrot.slane %v2463, %v2476
    %v2478 = vcombine.low %v2470, %v2477
    %v2479 = vcombine.low %v1610, %v1619
    %v2480 = vcombine.low %v1628, %v1637
    %v2482 = vunpack.c.l.s4 1983009808
    %v2483 = vunpack.c.0.s8 %v2482
    %v2484 = vlaneseq
    %v2485 = vshrl.u32 %v2484, 7
    %v2486 = vsub.s32 %v2483, %v2485
    %v2487 = vrot.slane %v2479, %v2486
    %v2489 = vunpack.c.l.s4 1983009808
    %v2490 = vunpack.c.0.s8 %v2489
    %v2491 = vlaneseq
    %v2492 = vshrl.u32 %v2491, 7
    %v2493 = vsub.s32 %v2490, %v2492
    %v2494 = vrot.slane %v2480, %v2493
    %v2495 = vcombine.low %v2487, %v2494
    %v2496 = vcombine.low %v1646, %v1655
    %v2497 = vcombine.low %v1664, %v1673
    %v2499 = vunpack.c.l.s4 1983009808
    %v2500 = vunpack.c.0.s8 %v2499
    %v2501 = vlaneseq
    %v2502 = vshrl.u32 %v2501, 7
    %v2503 = vsub.s32 %v2500, %v2502
    %v2504 = vrot.slane %v2496, %v2503
    %v2506 = vunpack.c.l.s4 1983009808
    %v2507 = vunpack.c.0.s8 %v2506
    %v2508 = vlaneseq
    %v2509 = vshrl.u32 %v2508, 7
    %v2510 = vsub.s32 %v2507, %v2509
    %v2511 = vrot.slane %v2497, %v2510
    %v2512 = vcombine.low %v2504, %v2511
    %v2513 = vcombine.low %v1682, %v1691
    %v2514 = vcombine.low %v1700, %v1709
    %v2516 = vunpack.c.l.s4 1983009808
    %v2517 = vunpack.c.0.s8 %v2516
    %v2518 = vlaneseq
    %v2519 = vshrl.u32 %v2518, 7
    %v2520 = vsub.s32 %v2517, %v2519
    %v2521 = vrot.slane %v2513, %v2520
    %v2523 = vunpack.c.l.s4 1983009808
    %v2524 = vunpack.c.0.s8 %v2523
    %v2525 = vlaneseq
    %v2526 = vshrl.u32 %v2525, 7
    %v2527 = vsub.s32 %v2524, %v2526
    %v2528 = vrot.slane %v2514, %v2527
    %v2529 = vcombine.low %v2521, %v2528
    %v2530 = vcombine.low %v1718, %v1727
    %v2531 = vcombine.low %v1736, %v1745
    %v2533 = vunpack.c.l.s4 1983009808
    %v2534 = vunpack.c.0.s8 %v2533
    %v2535 = vlaneseq
    %v2536 = vshrl.u32 %v2535, 7
    %v2537 = vsub.s32 %v2534, %v2536
    %v2538 = vrot.slane %v2530, %v2537
    %v2540 = vunpack.c.l.s4 1983009808
    %v2541 = vunpack.c.0.s8 %v2540
    %v2542 = vlaneseq
    %v2543 = vshrl.u32 %v2542, 7
    %v2544 = vsub.s32 %v2541, %v2543
    %v2545 = vrot.slane %v2531, %v2544
    %v2546 = vcombine.low %v2538, %v2545
    %v2547 = vcombine.low %v603, %v612
    %v2548 = vcombine.low %v621, %v630
    %v2550 = vunpack.c.l.s4 1983009808
    %v2551 = vunpack.c.0.s8 %v2550
    %v2552 = vlaneseq
    %v2553 = vshrl.u32 %v2552, 7
    %v2554 = vsub.s32 %v2551, %v2553
    %v2555 = vrot.slane %v2547, %v2554
    %v2557 = vunpack.c.l.s4 1983009808
    %v2558 = vunpack.c.0.s8 %v2557
    %v2559 = vlaneseq
    %v2560 = vshrl.u32 %v2559, 7
    %v2561 = vsub.s32 %v2558, %v2560
    %v2562 = vrot.slane %v2548, %v2561
    %v2563 = vcombine.low %v2555, %v2562
    %v2564 = vcombine.low %v639, %v648
    %v2565 = vcombine.low %v657, %v666
    %v2567 = vunpack.c.l.s4 1983009808
    %v2568 = vunpack.c.0.s8 %v2567
    %v2569 = vlaneseq
    %v2570 = vshrl.u32 %v2569, 7
    %v2571 = vsub.s32 %v2568, %v2570
    %v2572 = vrot.slane %v2564, %v2571
    %v2574 = vunpack.c.l.s4 1983009808
    %v2575 = vunpack.c.0.s8 %v2574
    %v2576 = vlaneseq
    %v2577 = vshrl.u32 %v2576, 7
    %v2578 = vsub.s32 %v2575, %v2577
    %v2579 = vrot.slane %v2565, %v2578
    %v2580 = vcombine.low %v2572, %v2579
    %v2581 = vcombine.low %v675, %v684
    %v2582 = vcombine.low %v693, %v702
    %v2584 = vunpack.c.l.s4 1983009808
    %v2585 = vunpack.c.0.s8 %v2584
    %v2586 = vlaneseq
    %v2587 = vshrl.u32 %v2586, 7
    %v2588 = vsub.s32 %v2585, %v2587
    %v2589 = vrot.slane %v2581, %v2588
    %v2591 = vunpack.c.l.s4 1983009808
    %v2592 = vunpack.c.0.s8 %v2591
    %v2593 = vlaneseq
    %v2594 = vshrl.u32 %v2593, 7
    %v2595 = vsub.s32 %v2592, %v2594
    %v2596 = vrot.slane %v2582, %v2595
    %v2597 = vcombine.low %v2589, %v2596
    %v2598 = vcombine.low %v711, %v720
    %v2599 = vcombine.low %v729, %v738
    %v2601 = vunpack.c.l.s4 1983009808
    %v2602 = vunpack.c.0.s8 %v2601
    %v2603 = vlaneseq
    %v2604 = vshrl.u32 %v2603, 7
    %v2605 = vsub.s32 %v2602, %v2604
    %v2606 = vrot.slane %v2598, %v2605
    %v2608 = vunpack.c.l.s4 1983009808
    %v2609 = vunpack.c.0.s8 %v2608
    %v2610 = vlaneseq
    %v2611 = vshrl.u32 %v2610, 7
    %v2612 = vsub.s32 %v2609, %v2611
    %v2613 = vrot.slane %v2599, %v2612
    %v2614 = vcombine.low %v2606, %v2613
    %v2615 = vcombine.low %v747, %v756
    %v2616 = vcombine.low %v765, %v774
    %v2618 = vunpack.c.l.s4 1983009808
    %v2619 = vunpack.c.0.s8 %v2618
    %v2620 = vlaneseq
    %v2621 = vshrl.u32 %v2620, 7
    %v2622 = vsub.s32 %v2619, %v2621
    %v2623 = vrot.slane %v2615, %v2622
    %v2625 = vunpack.c.l.s4 1983009808
    %v2626 = vunpack.c.0.s8 %v2625
    %v2627 = vlaneseq
    %v2628 = vshrl.u32 %v2627, 7
    %v2629 = vsub.s32 %v2626, %v2628
    %v2630 = vrot.slane %v2616, %v2629
    %v2631 = vcombine.low %v2623, %v2630
    %v2632 = vcombine.low %v783, %v792
    %v2633 = vcombine.low %v801, %v810
    %v2635 = vunpack.c.l.s4 1983009808
    %v2636 = vunpack.c.0.s8 %v2635
    %v2637 = vlaneseq
    %v2638 = vshrl.u32 %v2637, 7
    %v2639 = vsub.s32 %v2636, %v2638
    %v2640 = vrot.slane %v2632, %v2639
    %v2642 = vunpack.c.l.s4 1983009808
    %v2643 = vunpack.c.0.s8 %v2642
    %v2644 = vlaneseq
    %v2645 = vshrl.u32 %v2644, 7
    %v2646 = vsub.s32 %v2643, %v2645
    %v2647 = vrot.slane %v2633, %v2646
    %v2648 = vcombine.low %v2640, %v2647
    %v2649 = vcombine.low %v819, %v828
    %v2650 = vcombine.low %v837, %v846
    %v2652 = vunpack.c.l.s4 1983009808
    %v2653 = vunpack.c.0.s8 %v2652
    %v2654 = vlaneseq
    %v2655 = vshrl.u32 %v2654, 7
    %v2656 = vsub.s32 %v2653, %v2655
    %v2657 = vrot.slane %v2649, %v2656
    %v2659 = vunpack.c.l.s4 1983009808
    %v2660 = vunpack.c.0.s8 %v2659
    %v2661 = vlaneseq
    %v2662 = vshrl.u32 %v2661, 7
    %v2663 = vsub.s32 %v2660, %v2662
    %v2664 = vrot.slane %v2650, %v2663
    %v2665 = vcombine.low %v2657, %v2664
    %v2666 = vcombine.low %v855, %v864
    %v2667 = vcombine.low %v873, %v882
    %v2669 = vunpack.c.l.s4 1983009808
    %v2670 = vunpack.c.0.s8 %v2669
    %v2671 = vlaneseq
    %v2672 = vshrl.u32 %v2671, 7
    %v2673 = vsub.s32 %v2670, %v2672
    %v2674 = vrot.slane %v2666, %v2673
    %v2676 = vunpack.c.l.s4 1983009808
    %v2677 = vunpack.c.0.s8 %v2676
    %v2678 = vlaneseq
    %v2679 = vshrl.u32 %v2678, 7
    %v2680 = vsub.s32 %v2677, %v2679
    %v2681 = vrot.slane %v2667, %v2680
    %v2682 = vcombine.low %v2674, %v2681
    %v2683 = vcombine.low %v891, %v900
    %v2684 = vcombine.low %v909, %v918
    %v2686 = vunpack.c.l.s4 1983009808
    %v2687 = vunpack.c.0.s8 %v2686
    %v2688 = vlaneseq
    %v2689 = vshrl.u32 %v2688, 7
    %v2690 = vsub.s32 %v2687, %v2689
    %v2691 = vrot.slane %v2683, %v2690
    %v2693 = vunpack.c.l.s4 1983009808
    %v2694 = vunpack.c.0.s8 %v2693
    %v2695 = vlaneseq
    %v2696 = vshrl.u32 %v2695, 7
    %v2697 = vsub.s32 %v2694, %v2696
    %v2698 = vrot.slane %v2684, %v2697
    %v2699 = vcombine.low %v2691, %v2698
    %v2700 = vcombine.low %v927, %v936
    %v2701 = vcombine.low %v945, %v954
    %v2703 = vunpack.c.l.s4 1983009808
    %v2704 = vunpack.c.0.s8 %v2703
    %v2705 = vlaneseq
    %v2706 = vshrl.u32 %v2705, 7
    %v2707 = vsub.s32 %v2704, %v2706
    %v2708 = vrot.slane %v2700, %v2707
    %v2710 = vunpack.c.l.s4 1983009808
    %v2711 = vunpack.c.0.s8 %v2710
    %v2712 = vlaneseq
    %v2713 = vshrl.u32 %v2712, 7
    %v2714 = vsub.s32 %v2711, %v2713
    %v2715 = vrot.slane %v2701, %v2714
    %v2716 = vcombine.low %v2708, %v2715
    %v2717 = vcombine.low %v963, %v972
    %v2718 = vcombine.low %v981, %v990
    %v2720 = vunpack.c.l.s4 1983009808
    %v2721 = vunpack.c.0.s8 %v2720
    %v2722 = vlaneseq
    %v2723 = vshrl.u32 %v2722, 7
    %v2724 = vsub.s32 %v2721, %v2723
    %v2725 = vrot.slane %v2717, %v2724
    %v2727 = vunpack.c.l.s4 1983009808
    %v2728 = vunpack.c.0.s8 %v2727
    %v2729 = vlaneseq
    %v2730 = vshrl.u32 %v2729, 7
    %v2731 = vsub.s32 %v2728, %v2730
    %v2732 = vrot.slane %v2718, %v2731
    %v2733 = vcombine.low %v2725, %v2732
    %v2734 = vcombine.low %v999, %v1008
    %v2735 = vcombine.low %v1017, %v1026
    %v2737 = vunpack.c.l.s4 1983009808
    %v2738 = vunpack.c.0.s8 %v2737
    %v2739 = vlaneseq
    %v2740 = vshrl.u32 %v2739, 7
    %v2741 = vsub.s32 %v2738, %v2740
    %v2742 = vrot.slane %v2734, %v2741
    %v2744 = vunpack.c.l.s4 1983009808
    %v2745 = vunpack.c.0.s8 %v2744
    %v2746 = vlaneseq
    %v2747 = vshrl.u32 %v2746, 7
    %v2748 = vsub.s32 %v2745, %v2747
    %v2749 = vrot.slane %v2735, %v2748
    %v2750 = vcombine.low %v2742, %v2749
    %v2751 = vcombine.low %v1035, %v1044
    %v2752 = vcombine.low %v1053, %v1062
    %v2754 = vunpack.c.l.s4 1983009808
    %v2755 = vunpack.c.0.s8 %v2754
    %v2756 = vlaneseq
    %v2757 = vshrl.u32 %v2756, 7
    %v2758 = vsub.s32 %v2755, %v2757
    %v2759 = vrot.slane %v2751, %v2758
    %v2761 = vunpack.c.l.s4 1983009808
    %v2762 = vunpack.c.0.s8 %v2761
    %v2763 = vlaneseq
    %v2764 = vshrl.u32 %v2763, 7
    %v2765 = vsub.s32 %v2762, %v2764
    %v2766 = vrot.slane %v2752, %v2765
    %v2767 = vcombine.low %v2759, %v2766
    %v2768 = vcombine.low %v1071, %v1080
    %v2769 = vcombine.low %v1089, %v1098
    %v2771 = vunpack.c.l.s4 1983009808
    %v2772 = vunpack.c.0.s8 %v2771
    %v2773 = vlaneseq
    %v2774 = vshrl.u32 %v2773, 7
    %v2775 = vsub.s32 %v2772, %v2774
    %v2776 = vrot.slane %v2768, %v2775
    %v2778 = vunpack.c.l.s4 1983009808
    %v2779 = vunpack.c.0.s8 %v2778
    %v2780 = vlaneseq
    %v2781 = vshrl.u32 %v2780, 7
    %v2782 = vsub.s32 %v2779, %v2781
    %v2783 = vrot.slane %v2769, %v2782
    %v2784 = vcombine.low %v2776, %v2783
    %v2785 = vcombine.low %v1107, %v1116
    %v2786 = vcombine.low %v1125, %v1134
    %v2788 = vunpack.c.l.s4 1983009808
    %v2789 = vunpack.c.0.s8 %v2788
    %v2790 = vlaneseq
    %v2791 = vshrl.u32 %v2790, 7
    %v2792 = vsub.s32 %v2789, %v2791
    %v2793 = vrot.slane %v2785, %v2792
    %v2795 = vunpack.c.l.s4 1983009808
    %v2796 = vunpack.c.0.s8 %v2795
    %v2797 = vlaneseq
    %v2798 = vshrl.u32 %v2797, 7
    %v2799 = vsub.s32 %v2796, %v2798
    %v2800 = vrot.slane %v2786, %v2799
    %v2801 = vcombine.low %v2793, %v2800
    %v2802 = vcombine.low %v1143, %v1152
    %v2803 = vcombine.low %v1161, %v1170
    %v2805 = vunpack.c.l.s4 1983009808
    %v2806 = vunpack.c.0.s8 %v2805
    %v2807 = vlaneseq
    %v2808 = vshrl.u32 %v2807, 7
    %v2809 = vsub.s32 %v2806, %v2808
    %v2810 = vrot.slane %v2802, %v2809
    %v2812 = vunpack.c.l.s4 1983009808
    %v2813 = vunpack.c.0.s8 %v2812
    %v2814 = vlaneseq
    %v2815 = vshrl.u32 %v2814, 7
    %v2816 = vsub.s32 %v2813, %v2815
    %v2817 = vrot.slane %v2803, %v2816
    %v2818 = vcombine.low %v2810, %v2817
    %v2819 = vcombine.low %v1179, %v1188
    %v2820 = vcombine.low %v1197, %v1206
    %v2822 = vunpack.c.l.s4 1983009808
    %v2823 = vunpack.c.0.s8 %v2822
    %v2824 = vlaneseq
    %v2825 = vshrl.u32 %v2824, 7
    %v2826 = vsub.s32 %v2823, %v2825
    %v2827 = vrot.slane %v2819, %v2826
    %v2829 = vunpack.c.l.s4 1983009808
    %v2830 = vunpack.c.0.s8 %v2829
    %v2831 = vlaneseq
    %v2832 = vshrl.u32 %v2831, 7
    %v2833 = vsub.s32 %v2830, %v2832
    %v2834 = vrot.slane %v2820, %v2833
    %v2835 = vcombine.low %v2827, %v2834
    %v2836 = vcombine.low %v1215, %v1224
    %v2837 = vcombine.low %v1233, %v1242
    %v2839 = vunpack.c.l.s4 1983009808
    %v2840 = vunpack.c.0.s8 %v2839
    %v2841 = vlaneseq
    %v2842 = vshrl.u32 %v2841, 7
    %v2843 = vsub.s32 %v2840, %v2842
    %v2844 = vrot.slane %v2836, %v2843
    %v2846 = vunpack.c.l.s4 1983009808
    %v2847 = vunpack.c.0.s8 %v2846
    %v2848 = vlaneseq
    %v2849 = vshrl.u32 %v2848, 7
    %v2850 = vsub.s32 %v2847, %v2849
    %v2851 = vrot.slane %v2837, %v2850
    %v2852 = vcombine.low %v2844, %v2851
    %v2853 = vcombine.low %v1251, %v1260
    %v2854 = vcombine.low %v1269, %v1278
    %v2856 = vunpack.c.l.s4 1983009808
    %v2857 = vunpack.c.0.s8 %v2856
    %v2858 = vlaneseq
    %v2859 = vshrl.u32 %v2858, 7
    %v2860 = vsub.s32 %v2857, %v2859
    %v2861 = vrot.slane %v2853, %v2860
    %v2863 = vunpack.c.l.s4 1983009808
    %v2864 = vunpack.c.0.s8 %v2863
    %v2865 = vlaneseq
    %v2866 = vshrl.u32 %v2865, 7
    %v2867 = vsub.s32 %v2864, %v2866
    %v2868 = vrot.slane %v2854, %v2867
    %v2869 = vcombine.low %v2861, %v2868
    %v2870 = vcombine.low %v1287, %v1296
    %v2871 = vcombine.low %v1305, %v1314
    %v2873 = vunpack.c.l.s4 1983009808
    %v2874 = vunpack.c.0.s8 %v2873
    %v2875 = vlaneseq
    %v2876 = vshrl.u32 %v2875, 7
    %v2877 = vsub.s32 %v2874, %v2876
    %v2878 = vrot.slane %v2870, %v2877
    %v2880 = vunpack.c.l.s4 1983009808
    %v2881 = vunpack.c.0.s8 %v2880
    %v2882 = vlaneseq
    %v2883 = vshrl.u32 %v2882, 7
    %v2884 = vsub.s32 %v2881, %v2883
    %v2885 = vrot.slane %v2871, %v2884
    %v2886 = vcombine.low %v2878, %v2885
    %v2887 = vcombine.low %v1323, %v1332
    %v2888 = vcombine.low %v1341, %v1350
    %v2890 = vunpack.c.l.s4 1983009808
    %v2891 = vunpack.c.0.s8 %v2890
    %v2892 = vlaneseq
    %v2893 = vshrl.u32 %v2892, 7
    %v2894 = vsub.s32 %v2891, %v2893
    %v2895 = vrot.slane %v2887, %v2894
    %v2897 = vunpack.c.l.s4 1983009808
    %v2898 = vunpack.c.0.s8 %v2897
    %v2899 = vlaneseq
    %v2900 = vshrl.u32 %v2899, 7
    %v2901 = vsub.s32 %v2898, %v2900
    %v2902 = vrot.slane %v2888, %v2901
    %v2903 = vcombine.low %v2895, %v2902
    %v2904 = vcombine.low %v1359, %v1368
    %v2905 = vcombine.low %v1377, %v1386
    %v2907 = vunpack.c.l.s4 1983009808
    %v2908 = vunpack.c.0.s8 %v2907
    %v2909 = vlaneseq
    %v2910 = vshrl.u32 %v2909, 7
    %v2911 = vsub.s32 %v2908, %v2910
    %v2912 = vrot.slane %v2904, %v2911
    %v2914 = vunpack.c.l.s4 1983009808
    %v2915 = vunpack.c.0.s8 %v2914
    %v2916 = vlaneseq
    %v2917 = vshrl.u32 %v2916, 7
    %v2918 = vsub.s32 %v2915, %v2917
    %v2919 = vrot.slane %v2905, %v2918
    %v2920 = vcombine.low %v2912, %v2919
    %v2921 = vcombine.low %v1395, %v1404
    %v2922 = vcombine.low %v1413, %v1422
    %v2924 = vunpack.c.l.s4 1983009808
    %v2925 = vunpack.c.0.s8 %v2924
    %v2926 = vlaneseq
    %v2927 = vshrl.u32 %v2926, 7
    %v2928 = vsub.s32 %v2925, %v2927
    %v2929 = vrot.slane %v2921, %v2928
    %v2931 = vunpack.c.l.s4 1983009808
    %v2932 = vunpack.c.0.s8 %v2931
    %v2933 = vlaneseq
    %v2934 = vshrl.u32 %v2933, 7
    %v2935 = vsub.s32 %v2932, %v2934
    %v2936 = vrot.slane %v2922, %v2935
    %v2937 = vcombine.low %v2929, %v2936
    %v2938 = vcombine.low %v1431, %v1440
    %v2939 = vcombine.low %v1449, %v1458
    %v2941 = vunpack.c.l.s4 1983009808
    %v2942 = vunpack.c.0.s8 %v2941
    %v2943 = vlaneseq
    %v2944 = vshrl.u32 %v2943, 7
    %v2945 = vsub.s32 %v2942, %v2944
    %v2946 = vrot.slane %v2938, %v2945
    %v2948 = vunpack.c.l.s4 1983009808
    %v2949 = vunpack.c.0.s8 %v2948
    %v2950 = vlaneseq
    %v2951 = vshrl.u32 %v2950, 7
    %v2952 = vsub.s32 %v2949, %v2951
    %v2953 = vrot.slane %v2939, %v2952
    %v2954 = vcombine.low %v2946, %v2953
    %v2955 = vcombine.low %v1467, %v1476
    %v2956 = vcombine.low %v1485, %v1494
    %v2958 = vunpack.c.l.s4 1983009808
    %v2959 = vunpack.c.0.s8 %v2958
    %v2960 = vlaneseq
    %v2961 = vshrl.u32 %v2960, 7
    %v2962 = vsub.s32 %v2959, %v2961
    %v2963 = vrot.slane %v2955, %v2962
    %v2965 = vunpack.c.l.s4 1983009808
    %v2966 = vunpack.c.0.s8 %v2965
    %v2967 = vlaneseq
    %v2968 = vshrl.u32 %v2967, 7
    %v2969 = vsub.s32 %v2966, %v2968
    %v2970 = vrot.slane %v2956, %v2969
    %v2971 = vcombine.low %v2963, %v2970
    %v2972 = vcombine.low %v1503, %v1512
    %v2973 = vcombine.low %v1521, %v1530
    %v2975 = vunpack.c.l.s4 1983009808
    %v2976 = vunpack.c.0.s8 %v2975
    %v2977 = vlaneseq
    %v2978 = vshrl.u32 %v2977, 7
    %v2979 = vsub.s32 %v2976, %v2978
    %v2980 = vrot.slane %v2972, %v2979
    %v2982 = vunpack.c.l.s4 1983009808
    %v2983 = vunpack.c.0.s8 %v2982
    %v2984 = vlaneseq
    %v2985 = vshrl.u32 %v2984, 7
    %v2986 = vsub.s32 %v2983, %v2985
    %v2987 = vrot.slane %v2973, %v2986
    %v2988 = vcombine.low %v2980, %v2987
    %v2989 = vcombine.low %v1539, %v1548
    %v2990 = vcombine.low %v1557, %v1566
    %v2992 = vunpack.c.l.s4 1983009808
    %v2993 = vunpack.c.0.s8 %v2992
    %v2994 = vlaneseq
    %v2995 = vshrl.u32 %v2994, 7
    %v2996 = vsub.s32 %v2993, %v2995
    %v2997 = vrot.slane %v2989, %v2996
    %v2999 = vunpack.c.l.s4 1983009808
    %v3000 = vunpack.c.0.s8 %v2999
    %v3001 = vlaneseq
    %v3002 = vshrl.u32 %v3001, 7
    %v3003 = vsub.s32 %v3000, %v3002
    %v3004 = vrot.slane %v2990, %v3003
    %v3005 = vcombine.low %v2997, %v3004
    %v3006 = vcombine.low %v1575, %v1584
    %v3007 = vcombine.low %v1593, %v1602
    %v3009 = vunpack.c.l.s4 1983009808
    %v3010 = vunpack.c.0.s8 %v3009
    %v3011 = vlaneseq
    %v3012 = vshrl.u32 %v3011, 7
    %v3013 = vsub.s32 %v3010, %v3012
    %v3014 = vrot.slane %v3006, %v3013
    %v3016 = vunpack.c.l.s4 1983009808
    %v3017 = vunpack.c.0.s8 %v3016
    %v3018 = vlaneseq
    %v3019 = vshrl.u32 %v3018, 7
    %v3020 = vsub.s32 %v3017, %v3019
    %v3021 = vrot.slane %v3007, %v3020
    %v3022 = vcombine.low %v3014, %v3021
    %v3023 = vcombine.low %v1611, %v1620
    %v3024 = vcombine.low %v1629, %v1638
    %v3026 = vunpack.c.l.s4 1983009808
    %v3027 = vunpack.c.0.s8 %v3026
    %v3028 = vlaneseq
    %v3029 = vshrl.u32 %v3028, 7
    %v3030 = vsub.s32 %v3027, %v3029
    %v3031 = vrot.slane %v3023, %v3030
    %v3033 = vunpack.c.l.s4 1983009808
    %v3034 = vunpack.c.0.s8 %v3033
    %v3035 = vlaneseq
    %v3036 = vshrl.u32 %v3035, 7
    %v3037 = vsub.s32 %v3034, %v3036
    %v3038 = vrot.slane %v3024, %v3037
    %v3039 = vcombine.low %v3031, %v3038
    %v3040 = vcombine.low %v1647, %v1656
    %v3041 = vcombine.low %v1665, %v1674
    %v3043 = vunpack.c.l.s4 1983009808
    %v3044 = vunpack.c.0.s8 %v3043
    %v3045 = vlaneseq
    %v3046 = vshrl.u32 %v3045, 7
    %v3047 = vsub.s32 %v3044, %v3046
    %v3048 = vrot.slane %v3040, %v3047
    %v3050 = vunpack.c.l.s4 1983009808
    %v3051 = vunpack.c.0.s8 %v3050
    %v3052 = vlaneseq
    %v3053 = vshrl.u32 %v3052, 7
    %v3054 = vsub.s32 %v3051, %v3053
    %v3055 = vrot.slane %v3041, %v3054
    %v3056 = vcombine.low %v3048, %v3055
    %v3057 = vcombine.low %v1683, %v1692
    %v3058 = vcombine.low %v1701, %v1710
    %v3060 = vunpack.c.l.s4 1983009808
    %v3061 = vunpack.c.0.s8 %v3060
    %v3062 = vlaneseq
    %v3063 = vshrl.u32 %v3062, 7
    %v3064 = vsub.s32 %v3061, %v3063
    %v3065 = vrot.slane %v3057, %v3064
    %v3067 = vunpack.c.l.s4 1983009808
    %v3068 = vunpack.c.0.s8 %v3067
    %v3069 = vlaneseq
    %v3070 = vshrl.u32 %v3069, 7
    %v3071 = vsub.s32 %v3068, %v3070
    %v3072 = vrot.slane %v3058, %v3071
    %v3073 = vcombine.low %v3065, %v3072
    %v3074 = vcombine.low %v1719, %v1728
    %v3075 = vcombine.low %v1737, %v1746
    %v3077 = vunpack.c.l.s4 1983009808
    %v3078 = vunpack.c.0.s8 %v3077
    %v3079 = vlaneseq
    %v3080 = vshrl.u32 %v3079, 7
    %v3081 = vsub.s32 %v3078, %v3080
    %v3082 = vrot.slane %v3074, %v3081
    %v3084 = vunpack.c.l.s4 1983009808
    %v3085 = vunpack.c.0.s8 %v3084
    %v3086 = vlaneseq
    %v3087 = vshrl.u32 %v3086, 7
    %v3088 = vsub.s32 %v3085, %v3087
    %v3089 = vrot.slane %v3075, %v3088
    %v3090 = vcombine.low %v3082, %v3089
    %3155 = vxpose.xlu0.b32.start [1/16] %v2019, 128
    %3156 = vxpose.xlu0.b32.cont [2/16] %v2036, 128
    %3157 = vxpose.xlu0.b32.cont [3/16] %v2053, 128
    %3158 = vxpose.xlu0.b32.cont [4/16] %v2070, 128
    %3159 = vxpose.xlu0.b32.cont [5/16] %v2087, 128
    %3160 = vxpose.xlu0.b32.cont [6/16] %v2104, 128
    %3161 = vxpose.xlu0.b32.cont [7/16] %v2121, 128
    %3162 = vxpose.xlu0.b32.cont [8/16] %v2138, 128
    %3163 = vxpose.xlu0.b32.cont [9/16] %v2155, 128
    %3164 = vxpose.xlu0.b32.cont [10/16] %v2172, 128
    %3165 = vxpose.xlu0.b32.cont [11/16] %v2189, 128
    %3166 = vxpose.xlu0.b32.cont [12/16] %v2206, 128
    %3167 = vxpose.xlu0.b32.cont [13/16] %v2223, 128
    %3168 = vxpose.xlu0.b32.cont [14/16] %v2240, 128
    %3169 = vxpose.xlu0.b32.cont [15/16] %v2257, 128
    %3170 = vxpose.xlu0.b32.end [16/16] %v2274, 128
    %v3171 = vpop.trf.xlu0
    %v3172 = vpop.trf.xlu0
    %v3173 = vpop.trf.xlu0
    %v3174 = vpop.trf.xlu0
    %v3175 = vpop.trf.xlu0
    %v3176 = vpop.trf.xlu0
    %v3177 = vpop.trf.xlu0
    %v3178 = vpop.trf.xlu0
    %v3179 = vpop.trf.xlu0
    %v3180 = vpop.trf.xlu0
    %v3181 = vpop.trf.xlu0
    %v3182 = vpop.trf.xlu0
    %v3183 = vpop.trf.xlu0
    %v3184 = vpop.trf.xlu0
    %v3185 = vpop.trf.xlu0
    %v3186 = vpop.trf.xlu0
    %3187 = vxpose.xlu0.b32.start [1/16] %v2291, 128
    %3188 = vxpose.xlu0.b32.cont [2/16] %v2308, 128
    %3189 = vxpose.xlu0.b32.cont [3/16] %v2325, 128
    %3190 = vxpose.xlu0.b32.cont [4/16] %v2342, 128
    %3191 = vxpose.xlu0.b32.cont [5/16] %v2359, 128
    %3192 = vxpose.xlu0.b32.cont [6/16] %v2376, 128
    %3193 = vxpose.xlu0.b32.cont [7/16] %v2393, 128
    %3194 = vxpose.xlu0.b32.cont [8/16] %v2410, 128
    %3195 = vxpose.xlu0.b32.cont [9/16] %v2427, 128
    %3196 = vxpose.xlu0.b32.cont [10/16] %v2444, 128
    %3197 = vxpose.xlu0.b32.cont [11/16] %v2461, 128
    %3198 = vxpose.xlu0.b32.cont [12/16] %v2478, 128
    %3199 = vxpose.xlu0.b32.cont [13/16] %v2495, 128
    %3200 = vxpose.xlu0.b32.cont [14/16] %v2512, 128
    %3201 = vxpose.xlu0.b32.cont [15/16] %v2529, 128
    %3202 = vxpose.xlu0.b32.end [16/16] %v2546, 128
    %v3203 = vpop.trf.xlu0
    %v3204 = vpop.trf.xlu0
    %v3205 = vpop.trf.xlu0
    %v3206 = vpop.trf.xlu0
    %v3207 = vpop.trf.xlu0
    %v3208 = vpop.trf.xlu0
    %v3209 = vpop.trf.xlu0
    %v3210 = vpop.trf.xlu0
    %v3211 = vpop.trf.xlu0
    %v3212 = vpop.trf.xlu0
    %v3213 = vpop.trf.xlu0
    %v3214 = vpop.trf.xlu0
    %v3215 = vpop.trf.xlu0
    %v3216 = vpop.trf.xlu0
    %v3217 = vpop.trf.xlu0
    %v3218 = vpop.trf.xlu0
    %3219 = vxpose.xlu0.b32.start [1/16] %v2563, 128
    %3220 = vxpose.xlu0.b32.cont [2/16] %v2580, 128
    %3221 = vxpose.xlu0.b32.cont [3/16] %v2597, 128
    %3222 = vxpose.xlu0.b32.cont [4/16] %v2614, 128
    %3223 = vxpose.xlu0.b32.cont [5/16] %v2631, 128
    %3224 = vxpose.xlu0.b32.cont [6/16] %v2648, 128
    %3225 = vxpose.xlu0.b32.cont [7/16] %v2665, 128
    %3226 = vxpose.xlu0.b32.cont [8/16] %v2682, 128
    %3227 = vxpose.xlu0.b32.cont [9/16] %v2699, 128
    %3228 = vxpose.xlu0.b32.cont [10/16] %v2716, 128
    %3229 = vxpose.xlu0.b32.cont [11/16] %v2733, 128
    %3230 = vxpose.xlu0.b32.cont [12/16] %v2750, 128
    %3231 = vxpose.xlu0.b32.cont [13/16] %v2767, 128
    %3232 = vxpose.xlu0.b32.cont [14/16] %v2784, 128
    %3233 = vxpose.xlu0.b32.cont [15/16] %v2801, 128
    %3234 = vxpose.xlu0.b32.end [16/16] %v2818, 128
    %v3235 = vpop.trf.xlu0
    %v3236 = vpop.trf.xlu0
    %v3237 = vpop.trf.xlu0
    %v3238 = vpop.trf.xlu0
    %v3239 = vpop.trf.xlu0
    %v3240 = vpop.trf.xlu0
    %v3241 = vpop.trf.xlu0
    %v3242 = vpop.trf.xlu0
    %v3243 = vpop.trf.xlu0
    %v3244 = vpop.trf.xlu0
    %v3245 = vpop.trf.xlu0
    %v3246 = vpop.trf.xlu0
    %v3247 = vpop.trf.xlu0
    %v3248 = vpop.trf.xlu0
    %v3249 = vpop.trf.xlu0
    %v3250 = vpop.trf.xlu0
    %3251 = vxpose.xlu0.b32.start [1/16] %v2835, 128
    %3252 = vxpose.xlu0.b32.cont [2/16] %v2852, 128
    %3253 = vxpose.xlu0.b32.cont [3/16] %v2869, 128
    %3254 = vxpose.xlu0.b32.cont [4/16] %v2886, 128
    %3255 = vxpose.xlu0.b32.cont [5/16] %v2903, 128
    %3256 = vxpose.xlu0.b32.cont [6/16] %v2920, 128
    %3257 = vxpose.xlu0.b32.cont [7/16] %v2937, 128
    %3258 = vxpose.xlu0.b32.cont [8/16] %v2954, 128
    %3259 = vxpose.xlu0.b32.cont [9/16] %v2971, 128
    %3260 = vxpose.xlu0.b32.cont [10/16] %v2988, 128
    %3261 = vxpose.xlu0.b32.cont [11/16] %v3005, 128
    %3262 = vxpose.xlu0.b32.cont [12/16] %v3022, 128
    %3263 = vxpose.xlu0.b32.cont [13/16] %v3039, 128
    %3264 = vxpose.xlu0.b32.cont [14/16] %v3056, 128
    %3265 = vxpose.xlu0.b32.cont [15/16] %v3073, 128
    %3266 = vxpose.xlu0.b32.end [16/16] %v3090, 128
    %v3267 = vpop.trf.xlu0
    %v3268 = vpop.trf.xlu0
    %v3269 = vpop.trf.xlu0
    %v3270 = vpop.trf.xlu0
    %v3271 = vpop.trf.xlu0
    %v3272 = vpop.trf.xlu0
    %v3273 = vpop.trf.xlu0
    %v3274 = vpop.trf.xlu0
    %v3275 = vpop.trf.xlu0
    %v3276 = vpop.trf.xlu0
    %v3277 = vpop.trf.xlu0
    %v3278 = vpop.trf.xlu0
    %v3279 = vpop.trf.xlu0
    %v3280 = vpop.trf.xlu0
    %v3281 = vpop.trf.xlu0
    %v3282 = vpop.trf.xlu0
    %v3287 = vcombine.low %v3171, %v3203
    %v3288 = vcombine.low %v3235, %v3267
    %v3289 = vcombine.low %v3287, %v3288
    %v3290 = vcombine.high %v3287, %v3288
    %3293 = vst [vmem:[#allocation5] sm:$0xff] %v3289
    %3294 = vst [vmem:[#allocation5 + $0x8] sm:$0xff] %v3290
    // Predicated region
    $region10: #{tpu_custom_call.1} parent=1 // pred_check
      _
    $region11: #{tpu_custom_call.1} parent=1 // pred_check_branch
      %3296 = sbr.rel (0) target = $region13
    $region12: #{tpu_custom_call.1} parent=1 // pred_region
      %s3298 = ssub.s32 256, 256
      %3299 = vsyncadd [#allocation4], %s3298
      %s3301 = sshll.u32 [#allocation5], 4
      %s3302 = int_to_ptr.vmem [resolvable:$true] %s3301
      %3304 = dma.vmem_to_hbm [thread:$0]  %s3302, 256, %s1, [#allocation4]
    $region13: #{tpu_custom_call.1} parent=1 // pred_fallthru
      _
    // Predicated region
    $region14: #{tpu_custom_call.1} parent=1 // pred_check
      _
    $region15: #{tpu_custom_call.1} parent=1 // pred_check_branch
      %3306 = sbr.rel (0) target = $region17
    $region16: #{tpu_custom_call.1} parent=1 // pred_region
      %3307 = dma.done [#allocation4], 256
    $region17: #{tpu_custom_call.1} parent=1 // pred_fallthru
      _
    %3308 = vsyncpa [#allocation3], 1
    %3309 = vsyncpa [#allocation4], 1

</llo_original>
